<compile_context>
chip_gen: v7x
topology: tpu7x:2x2x1
jax: 0.10.0
libtpu: 0.0.40
codegen_flags: <defaults>
</compile_context>

<pallas_src>
import jax
import jax.numpy as jnp
from jax.experimental import pallas as pl
from jax.experimental.pallas import tpu as pltpu

# ---- dimensions implied by the PyTorch module (round(), like torch) ----
D_IN = 115
D75 = round(115 * 0.75)   # 86
D50 = round(115 * 0.5)    # 58
D33 = round(115 * 0.33)   # 38
D25 = round(115 * 0.25)   # 29

P = 128                    # lane-padded feature width
N_LAYERS = 8               # 9 torch Linear layers, mu/log-sigma heads fused


# --------------------------------------------------------------------------
# kernel
# --------------------------------------------------------------------------
def vae_kernel(x_ref, eps_ref, w_ref, b_ref, out_ref):
    f32 = jnp.float32
    bf16 = jnp.bfloat16

    def dense(h, i, relu=True):
        acc = jnp.dot(h.astype(bf16), w_ref[i], preferred_element_type=f32)
        acc = acc + b_ref[i]
        return jnp.maximum(acc, 0.0) if relu else acc

    # ----- encoder -----
    h = dense(x_ref[...], 0)
    h = dense(h, 1)
    h = dense(h, 2)
    head = dense(h, 3, relu=False)      # lanes [0,29): mu, [29,58): log-sigma

    lane = jax.lax.broadcasted_iota(jnp.int32, head.shape, 1)
    mu = jnp.where(lane < D25, head, 0.0)
    log_sigma = jnp.where(
        jnp.logical_and(lane >= D25, lane < 2 * D25), head, 0.0)
    # eps is pre-placed in lanes [29,58) (zero elsewhere), so exp(0)=1 lanes
    # contribute nothing:  z = [mu | sigma*eps | 0...]
    z = mu + jnp.exp(log_sigma) * eps_ref[...]
    # TODO(synk): encoder.kl is a stored side effect of the torch module (not
    # part of forward()'s return value); it is intentionally not materialized.

    # ----- decoder -----
    # w_ref[4] has rows [0:29) and [29:58) duplicated, so the split z layout
    # collapses to (mu + sigma*eps) @ W_dec1.
    h = dense(z, 4)
    h = dense(h, 5)
    h = dense(h, 6)
    out_ref[...] = dense(h, 7, relu=False)


# --------------------------------------------------------------------------
# parameter construction / packing
# --------------------------------------------------------------------------
def init_params(key):
    """Deterministic synthetic torch-equivalent params. Weights are (in, out)."""
    dims = [(D_IN, D75), (D75, D50), (D50, D33), (D33, D25), (D33, D25),
            (D25, D33), (D33, D50), (D50, D75), (D75, D_IN)]
    params = []
    keys = jax.random.split(key, len(dims))
    for idx, (k, (din, dout)) in enumerate(zip(keys, dims)):
        kw, kb = jax.random.split(k)
        scale = 1.0 / jnp.sqrt(jnp.float32(din))
        if idx == 4:   # log-sigma head: keep small so exp() stays O(1)
            scale = scale * 0.2
        w = scale * jax.random.normal(kw, (din, dout), jnp.float32)
        b = 0.01 * jax.random.normal(kb, (dout,), jnp.float32)
        params.append((w, b))
    return params


def pack_params(params):
    """Pack 9 layers into a bf16 (8,128,128) weight slab + f32 (8,1,128) bias slab."""
    (ew1, eb1), (ew2, eb2), (ew3, eb3), (ew4, eb4), (ew5, eb5), \
        (dw1, db1), (dw2, db2), (dw3, db3), (dw4, db4) = params

    def pad_w(w):
        return jnp.zeros((P, P), jnp.float32).at[:w.shape[0], :w.shape[1]].set(w)

    def pad_b(b):
        return jnp.zeros((P,), jnp.float32).at[:b.shape[0]].set(b)

    # fused encoder head: cols [0,29) = mu head, cols [29,58) = log-sigma head
    w_head = (jnp.zeros((P, P), jnp.float32)
              .at[:D33, :D25].set(ew4)
              .at[:D33, D25:2 * D25].set(ew5))
    b_head = (jnp.zeros((P,), jnp.float32)
              .at[:D25].set(eb4)
              .at[D25:2 * D25].set(eb5))

    # first decoder layer with duplicated rows (consumes z = [mu | sigma*eps])
    w_dec1 = (jnp.zeros((P, P), jnp.float32)
              .at[:D25, :D33].set(dw1)
              .at[D25:2 * D25, :D33].set(dw1))

    w_list = [pad_w(ew1), pad_w(ew2), pad_w(ew3), w_head,
              w_dec1, pad_w(dw2), pad_w(dw3), pad_w(dw4)]
    b_list = [pad_b(eb1), pad_b(eb2), pad_b(eb3), b_head,
              pad_b(db1), pad_b(db2), pad_b(db3), pad_b(db4)]

    w_slab = jnp.stack(w_list).astype(jnp.bfloat16)               # (8,128,128)
    b_slab = jnp.stack(b_list).reshape(N_LAYERS, 1, P).astype(jnp.float32)
    return w_slab, b_slab


# --------------------------------------------------------------------------
# wrapper
# --------------------------------------------------------------------------
def _round_up(n, m):
    return (n + m - 1) // m * m


def vae_forward(x, eps, w_slab, b_slab, *, block_rows=1024):
    B = x.shape[0]
    bb = _round_up(min(block_rows, B), 8)        # batch block (sublane-aligned)
    B_pad = _round_up(B, bb)

    # lane-dense, zero-padded inputs; eps lives in lanes [29,58)
    xp = jnp.zeros((B_pad, P), jnp.float32).at[:B, :D_IN].set(x)
    ep = jnp.zeros((B_pad, P), jnp.float32).at[:B, D25:2 * D25].set(eps)

    grid = (B_pad // bb,)
    out = pl.pallas_call(
        vae_kernel,
        out_shape=jax.ShapeDtypeStruct((B_pad, P), jnp.float32),
        grid=grid,
        in_specs=[
            pl.BlockSpec((bb, P), lambda i: (i, 0)),                 # x
            pl.BlockSpec((bb, P), lambda i: (i, 0)),                 # eps
            pl.BlockSpec((N_LAYERS, P, P), lambda i: (0, 0, 0)),     # weights (resident)
            pl.BlockSpec((N_LAYERS, 1, P), lambda i: (0, 0, 0)),     # biases  (resident)
        ],
        out_specs=pl.BlockSpec((bb, P), lambda i: (i, 0)),
        compiler_params=pltpu.CompilerParams(
            dimension_semantics=("parallel",),       # megacore split on v7x
            vmem_limit_bytes=32 * 1024 * 1024,
        ),
    )(xp, ep, w_slab, b_slab)
    return out[:B, :D_IN]


# --------------------------------------------------------------------------
# references
# --------------------------------------------------------------------------
def vae_reference_f32(x, eps, params):
    """Straightforward f32 math, mirroring the torch module."""
    (ew1, eb1), (ew2, eb2), (ew3, eb3), (ew4, eb4), (ew5, eb5), \
        (dw1, db1), (dw2, db2), (dw3, db3), (dw4, db4) = params
    relu = jax.nn.relu
    h = relu(x @ ew1 + eb1)
    h = relu(h @ ew2 + eb2)
    h = relu(h @ ew3 + eb3)
    mu = h @ ew4 + eb4
    sigma = jnp.exp(h @ ew5 + eb5)
    z = mu + sigma * eps
    h = relu(z @ dw1 + db1)
    h = relu(h @ dw2 + db2)
    h = relu(h @ dw3 + db3)
    return h @ dw4 + db4


def vae_reference_packed(xp, ep, w_slab, b_slab):
    """Pure-JAX mirror of the packed/padded bf16 kernel math (tight check)."""
    f32 = jnp.float32
    bf16 = jnp.bfloat16

    def dense(h, i, relu=True):
        a = jnp.dot(h.astype(bf16), w_slab[i], preferred_element_type=f32)
        a = a + b_slab[i]
        return jnp.maximum(a, 0.0) if relu else a

    h = dense(xp, 0)
    h = dense(h, 1)
    h = dense(h, 2)
    head = dense(h, 3, relu=False)
    lane = jax.lax.broadcasted_iota(jnp.int32, head.shape, 1)
    mu = jnp.where(lane < D25, head, 0.0)
    log_sigma = jnp.where((lane >= D25) & (lane < 2 * D25), head, 0.0)
    z = mu + jnp.exp(log_sigma) * ep
    h = dense(z, 4)
    h = dense(h, 5)
    h = dense(h, 6)
    return dense(h, 7, relu=False)


# --------------------------------------------------------------------------
if __name__ == "__main__":
    key = jax.random.PRNGKey(0)
    k_params, k_x, k_eps = jax.random.split(key, 3)

    B = 1000              # deliberately not a multiple of the batch block
    block_rows = 256      # 4 grid steps; production default is 1024+

    params = init_params(k_params)
    w_slab, b_slab = pack_params(params)

    x = jax.random.normal(k_x, (B, D_IN), jnp.float32)
    # the torch module samples N(0,1) internally; the noise is passed in
    # explicitly so the kernel stays deterministic / verifiable.
    eps = jax.random.normal(k_eps, (B, D25), jnp.float32)

    out = vae_forward(x, eps, w_slab, b_slab, block_rows=block_rows)
    out = jax.block_until_ready(out)
    assert out.shape == (B, D_IN)

    # (1) tight check against a pure-JAX mirror of the packed bf16 math
    xp = jnp.zeros((B, P), jnp.float32).at[:, :D_IN].set(x)
    ep = jnp.zeros((B, P), jnp.float32).at[:, D25:2 * D25].set(eps)
    ref_packed = vae_reference_packed(xp, ep, w_slab, b_slab)[:, :D_IN]
    assert jnp.allclose(out, ref_packed, atol=5e-3, rtol=5e-3)

    # (2) semantic check against straightforward f32 module math (bf16 tolerance)
    ref_f32 = vae_reference_f32(x, eps, params)
    assert jnp.allclose(out, ref_f32, atol=1e-1, rtol=1e-1)

    print("KERNEL_OK")
</pallas_src>

<mosaic_0001>
module attributes {stable_mosaic.version = 11 : i64} {
  func.func @vae_kernel(%arg0: i32, %arg1: memref<256x128xf32, #tpu.memory_space<vmem>>, %arg2: memref<256x128xf32, #tpu.memory_space<vmem>>, %arg3: memref<8x128x128xbf16, #tpu.memory_space<vmem>>, %arg4: memref<8x1x128xf32, #tpu.memory_space<vmem>>, %arg5: memref<256x128xf32, #tpu.memory_space<vmem>>) attributes {dimension_semantics = [#tpu.dimension_semantics<parallel>], iteration_bounds = array<i64: 4>, scalar_prefetch = 0 : i64, scratch_operands = 0 : i64, tpu.core_type = #tpu.core_type<tc>, window_params = [{transform_indices = @transform_0, window_bounds = array<i64: 256, 128>}, {transform_indices = @transform_1, window_bounds = array<i64: 256, 128>}, {pipeline_mode = #tpu.pipeline_mode<synchronous>, transform_indices = @transform_2, window_bounds = array<i64: 8, 128, 128>}, {pipeline_mode = #tpu.pipeline_mode<synchronous>, transform_indices = @transform_3, window_bounds = array<i64: 8, 1, 128>}, {transform_indices = @transform_4, window_bounds = array<i64: 256, 128>}]} {
    %c0 = arith.constant 0 : index
    %c0_0 = arith.constant 0 : index
    %0 = vector.load %arg1[%c0, %c0_0] : memref<256x128xf32, #tpu.memory_space<vmem>>, vector<256x128xf32>
    %1 = arith.truncf %0 : vector<256x128xf32> to vector<256x128xbf16>
    %c0_1 = arith.constant 0 : index
    %c0_2 = arith.constant 0 : index
    %c0_3 = arith.constant 0 : index
    %2 = vector.load %arg3[%c0_1, %c0_2, %c0_3] : memref<8x128x128xbf16, #tpu.memory_space<vmem>>, vector<1x128x128xbf16>
    %3 = vector.shape_cast %2 : vector<1x128x128xbf16> to vector<128x128xbf16>
    %cst = arith.constant dense<0.000000e+00> : vector<256x128xf32>
    %4 = tpu.matmul %1, %3, %cst {dimension_numbers = #tpu.dot_dimension_numbers<[1], [0], [0], [1], [0, 0, 1, 1], [], []>} : vector<256x128xbf16>, vector<128x128xbf16>, vector<256x128xf32> -> vector<256x128xf32>
    %c0_4 = arith.constant 0 : index
    %c0_5 = arith.constant 0 : index
    %c0_6 = arith.constant 0 : index
    %5 = vector.load %arg4[%c0_4, %c0_5, %c0_6] : memref<8x1x128xf32, #tpu.memory_space<vmem>>, vector<1x1x128xf32>
    %6 = vector.shape_cast %5 : vector<1x1x128xf32> to vector<1x128xf32>
    %7 = vector.broadcast %6 : vector<1x128xf32> to vector<256x128xf32>
    %8 = arith.addf %4, %7 : vector<256x128xf32>
    %cst_7 = arith.constant 0.000000e+00 : f32
    %9 = vector.broadcast %cst_7 : f32 to vector<256x128xf32>
    %10 = arith.maximumf %8, %9 : vector<256x128xf32>
    %11 = arith.truncf %10 : vector<256x128xf32> to vector<256x128xbf16>
    %c1 = arith.constant 1 : index
    %c0_8 = arith.constant 0 : index
    %c0_9 = arith.constant 0 : index
    %12 = vector.load %arg3[%c1, %c0_8, %c0_9] : memref<8x128x128xbf16, #tpu.memory_space<vmem>>, vector<1x128x128xbf16>
    %13 = vector.shape_cast %12 : vector<1x128x128xbf16> to vector<128x128xbf16>
    %cst_10 = arith.constant dense<0.000000e+00> : vector<256x128xf32>
    %14 = tpu.matmul %11, %13, %cst_10 {dimension_numbers = #tpu.dot_dimension_numbers<[1], [0], [0], [1], [0, 0, 1, 1], [], []>} : vector<256x128xbf16>, vector<128x128xbf16>, vector<256x128xf32> -> vector<256x128xf32>
    %c1_11 = arith.constant 1 : index
    %c0_12 = arith.constant 0 : index
    %c0_13 = arith.constant 0 : index
    %15 = vector.load %arg4[%c1_11, %c0_12, %c0_13] : memref<8x1x128xf32, #tpu.memory_space<vmem>>, vector<1x1x128xf32>
    %16 = vector.shape_cast %15 : vector<1x1x128xf32> to vector<1x128xf32>
    %17 = vector.broadcast %16 : vector<1x128xf32> to vector<256x128xf32>
    %18 = arith.addf %14, %17 : vector<256x128xf32>
    %cst_14 = arith.constant 0.000000e+00 : f32
    %19 = vector.broadcast %cst_14 : f32 to vector<256x128xf32>
    %20 = arith.maximumf %18, %19 : vector<256x128xf32>
    %21 = arith.truncf %20 : vector<256x128xf32> to vector<256x128xbf16>
    %c2 = arith.constant 2 : index
    %c0_15 = arith.constant 0 : index
    %c0_16 = arith.constant 0 : index
    %22 = vector.load %arg3[%c2, %c0_15, %c0_16] : memref<8x128x128xbf16, #tpu.memory_space<vmem>>, vector<1x128x128xbf16>
    %23 = vector.shape_cast %22 : vector<1x128x128xbf16> to vector<128x128xbf16>
    %cst_17 = arith.constant dense<0.000000e+00> : vector<256x128xf32>
    %24 = tpu.matmul %21, %23, %cst_17 {dimension_numbers = #tpu.dot_dimension_numbers<[1], [0], [0], [1], [0, 0, 1, 1], [], []>} : vector<256x128xbf16>, vector<128x128xbf16>, vector<256x128xf32> -> vector<256x128xf32>
    %c2_18 = arith.constant 2 : index
    %c0_19 = arith.constant 0 : index
    %c0_20 = arith.constant 0 : index
    %25 = vector.load %arg4[%c2_18, %c0_19, %c0_20] : memref<8x1x128xf32, #tpu.memory_space<vmem>>, vector<1x1x128xf32>
    %26 = vector.shape_cast %25 : vector<1x1x128xf32> to vector<1x128xf32>
    %27 = vector.broadcast %26 : vector<1x128xf32> to vector<256x128xf32>
    %28 = arith.addf %24, %27 : vector<256x128xf32>
    %cst_21 = arith.constant 0.000000e+00 : f32
    %29 = vector.broadcast %cst_21 : f32 to vector<256x128xf32>
    %30 = arith.maximumf %28, %29 : vector<256x128xf32>
    %31 = arith.truncf %30 : vector<256x128xf32> to vector<256x128xbf16>
    %c3 = arith.constant 3 : index
    %c0_22 = arith.constant 0 : index
    %c0_23 = arith.constant 0 : index
    %32 = vector.load %arg3[%c3, %c0_22, %c0_23] : memref<8x128x128xbf16, #tpu.memory_space<vmem>>, vector<1x128x128xbf16>
    %33 = vector.shape_cast %32 : vector<1x128x128xbf16> to vector<128x128xbf16>
    %cst_24 = arith.constant dense<0.000000e+00> : vector<256x128xf32>
    %34 = tpu.matmul %31, %33, %cst_24 {dimension_numbers = #tpu.dot_dimension_numbers<[1], [0], [0], [1], [0, 0, 1, 1], [], []>} : vector<256x128xbf16>, vector<128x128xbf16>, vector<256x128xf32> -> vector<256x128xf32>
    %c3_25 = arith.constant 3 : index
    %c0_26 = arith.constant 0 : index
    %c0_27 = arith.constant 0 : index
    %35 = vector.load %arg4[%c3_25, %c0_26, %c0_27] : memref<8x1x128xf32, #tpu.memory_space<vmem>>, vector<1x1x128xf32>
    %36 = vector.shape_cast %35 : vector<1x1x128xf32> to vector<1x128xf32>
    %37 = vector.broadcast %36 : vector<1x128xf32> to vector<256x128xf32>
    %38 = arith.addf %34, %37 : vector<256x128xf32>
    %39 = tpu.iota {dimensions = array<i32: 1>} : vector<256x128xi32>
    %c29_i32 = arith.constant 29 : i32
    %40 = vector.broadcast %c29_i32 : i32 to vector<256x128xi32>
    %41 = arith.cmpi slt, %39, %40 : vector<256x128xi32>
    %cst_28 = arith.constant 0.000000e+00 : f32
    %42 = vector.broadcast %cst_28 : f32 to vector<256x128xf32>
    %43 = arith.select %41, %38, %42 : vector<256x128xi1>, vector<256x128xf32>
    %c29_i32_29 = arith.constant 29 : i32
    %44 = vector.broadcast %c29_i32_29 : i32 to vector<256x128xi32>
    %45 = arith.cmpi sge, %39, %44 : vector<256x128xi32>
    %c58_i32 = arith.constant 58 : i32
    %46 = vector.broadcast %c58_i32 : i32 to vector<256x128xi32>
    %47 = arith.cmpi slt, %39, %46 : vector<256x128xi32>
    %48 = arith.andi %45, %47 : vector<256x128xi1>
    %cst_30 = arith.constant 0.000000e+00 : f32
    %49 = vector.broadcast %cst_30 : f32 to vector<256x128xf32>
    %50 = arith.select %48, %38, %49 : vector<256x128xi1>, vector<256x128xf32>
    %51 = math.exp %50 : vector<256x128xf32>
    %c0_31 = arith.constant 0 : index
    %c0_32 = arith.constant 0 : index
    %52 = vector.load %arg2[%c0_31, %c0_32] : memref<256x128xf32, #tpu.memory_space<vmem>>, vector<256x128xf32>
    %53 = arith.mulf %51, %52 : vector<256x128xf32>
    %54 = arith.addf %43, %53 : vector<256x128xf32>
    %55 = arith.truncf %54 : vector<256x128xf32> to vector<256x128xbf16>
    %c4 = arith.constant 4 : index
    %c0_33 = arith.constant 0 : index
    %c0_34 = arith.constant 0 : index
    %56 = vector.load %arg3[%c4, %c0_33, %c0_34] : memref<8x128x128xbf16, #tpu.memory_space<vmem>>, vector<1x128x128xbf16>
    %57 = vector.shape_cast %56 : vector<1x128x128xbf16> to vector<128x128xbf16>
    %cst_35 = arith.constant dense<0.000000e+00> : vector<256x128xf32>
    %58 = tpu.matmul %55, %57, %cst_35 {dimension_numbers = #tpu.dot_dimension_numbers<[1], [0], [0], [1], [0, 0, 1, 1], [], []>} : vector<256x128xbf16>, vector<128x128xbf16>, vector<256x128xf32> -> vector<256x128xf32>
    %c4_36 = arith.constant 4 : index
    %c0_37 = arith.constant 0 : index
    %c0_38 = arith.constant 0 : index
    %59 = vector.load %arg4[%c4_36, %c0_37, %c0_38] : memref<8x1x128xf32, #tpu.memory_space<vmem>>, vector<1x1x128xf32>
    %60 = vector.shape_cast %59 : vector<1x1x128xf32> to vector<1x128xf32>
    %61 = vector.broadcast %60 : vector<1x128xf32> to vector<256x128xf32>
    %62 = arith.addf %58, %61 : vector<256x128xf32>
    %cst_39 = arith.constant 0.000000e+00 : f32
    %63 = vector.broadcast %cst_39 : f32 to vector<256x128xf32>
    %64 = arith.maximumf %62, %63 : vector<256x128xf32>
    %65 = arith.truncf %64 : vector<256x128xf32> to vector<256x128xbf16>
    %c5 = arith.constant 5 : index
    %c0_40 = arith.constant 0 : index
    %c0_41 = arith.constant 0 : index
    %66 = vector.load %arg3[%c5, %c0_40, %c0_41] : memref<8x128x128xbf16, #tpu.memory_space<vmem>>, vector<1x128x128xbf16>
    %67 = vector.shape_cast %66 : vector<1x128x128xbf16> to vector<128x128xbf16>
    %cst_42 = arith.constant dense<0.000000e+00> : vector<256x128xf32>
    %68 = tpu.matmul %65, %67, %cst_42 {dimension_numbers = #tpu.dot_dimension_numbers<[1], [0], [0], [1], [0, 0, 1, 1], [], []>} : vector<256x128xbf16>, vector<128x128xbf16>, vector<256x128xf32> -> vector<256x128xf32>
    %c5_43 = arith.constant 5 : index
    %c0_44 = arith.constant 0 : index
    %c0_45 = arith.constant 0 : index
    %69 = vector.load %arg4[%c5_43, %c0_44, %c0_45] : memref<8x1x128xf32, #tpu.memory_space<vmem>>, vector<1x1x128xf32>
    %70 = vector.shape_cast %69 : vector<1x1x128xf32> to vector<1x128xf32>
    %71 = vector.broadcast %70 : vector<1x128xf32> to vector<256x128xf32>
    %72 = arith.addf %68, %71 : vector<256x128xf32>
    %cst_46 = arith.constant 0.000000e+00 : f32
    %73 = vector.broadcast %cst_46 : f32 to vector<256x128xf32>
    %74 = arith.maximumf %72, %73 : vector<256x128xf32>
    %75 = arith.truncf %74 : vector<256x128xf32> to vector<256x128xbf16>
    %c6 = arith.constant 6 : index
    %c0_47 = arith.constant 0 : index
    %c0_48 = arith.constant 0 : index
    %76 = vector.load %arg3[%c6, %c0_47, %c0_48] : memref<8x128x128xbf16, #tpu.memory_space<vmem>>, vector<1x128x128xbf16>
    %77 = vector.shape_cast %76 : vector<1x128x128xbf16> to vector<128x128xbf16>
    %cst_49 = arith.constant dense<0.000000e+00> : vector<256x128xf32>
    %78 = tpu.matmul %75, %77, %cst_49 {dimension_numbers = #tpu.dot_dimension_numbers<[1], [0], [0], [1], [0, 0, 1, 1], [], []>} : vector<256x128xbf16>, vector<128x128xbf16>, vector<256x128xf32> -> vector<256x128xf32>
    %c6_50 = arith.constant 6 : index
    %c0_51 = arith.constant 0 : index
    %c0_52 = arith.constant 0 : index
    %79 = vector.load %arg4[%c6_50, %c0_51, %c0_52] : memref<8x1x128xf32, #tpu.memory_space<vmem>>, vector<1x1x128xf32>
    %80 = vector.shape_cast %79 : vector<1x1x128xf32> to vector<1x128xf32>
    %81 = vector.broadcast %80 : vector<1x128xf32> to vector<256x128xf32>
    %82 = arith.addf %78, %81 : vector<256x128xf32>
    %cst_53 = arith.constant 0.000000e+00 : f32
    %83 = vector.broadcast %cst_53 : f32 to vector<256x128xf32>
    %84 = arith.maximumf %82, %83 : vector<256x128xf32>
    %85 = arith.truncf %84 : vector<256x128xf32> to vector<256x128xbf16>
    %c7 = arith.constant 7 : index
    %c0_54 = arith.constant 0 : index
    %c0_55 = arith.constant 0 : index
    %86 = vector.load %arg3[%c7, %c0_54, %c0_55] : memref<8x128x128xbf16, #tpu.memory_space<vmem>>, vector<1x128x128xbf16>
    %87 = vector.shape_cast %86 : vector<1x128x128xbf16> to vector<128x128xbf16>
    %cst_56 = arith.constant dense<0.000000e+00> : vector<256x128xf32>
    %88 = tpu.matmul %85, %87, %cst_56 {dimension_numbers = #tpu.dot_dimension_numbers<[1], [0], [0], [1], [0, 0, 1, 1], [], []>} : vector<256x128xbf16>, vector<128x128xbf16>, vector<256x128xf32> -> vector<256x128xf32>
    %c7_57 = arith.constant 7 : index
    %c0_58 = arith.constant 0 : index
    %c0_59 = arith.constant 0 : index
    %89 = vector.load %arg4[%c7_57, %c0_58, %c0_59] : memref<8x1x128xf32, #tpu.memory_space<vmem>>, vector<1x1x128xf32>
    %90 = vector.shape_cast %89 : vector<1x1x128xf32> to vector<1x128xf32>
    %91 = vector.broadcast %90 : vector<1x128xf32> to vector<256x128xf32>
    %92 = arith.addf %88, %91 : vector<256x128xf32>
    %c0_60 = arith.constant 0 : index
    %c0_61 = arith.constant 0 : index
    %93 = vector.load %arg5[%c0_60, %c0_61] : memref<256x128xf32, #tpu.memory_space<vmem>>, vector<256x128xf32>
    tpu.vector_store %arg5[%c0_60, %c0_61], %92 {strides = array<i32>} : memref<256x128xf32, #tpu.memory_space<vmem>>, vector<256x128xf32>,
    return
  }
  func.func @transform_0(%arg0: i32) -> (i32, i32) {
    %c0_i32 = arith.constant 0 : i32
    %c0_i32_0 = arith.constant 0 : i32
    return %arg0, %c0_i32 : i32, i32
  }
  func.func @transform_1(%arg0: i32) -> (i32, i32) {
    %c0_i32 = arith.constant 0 : i32
    %c0_i32_0 = arith.constant 0 : i32
    return %arg0, %c0_i32 : i32, i32
  }
  func.func @transform_2(%arg0: i32) -> (i32, i32, i32) {
    %c0_i32 = arith.constant 0 : i32
    %c0_i32_0 = arith.constant 0 : i32
    %c0_i32_1 = arith.constant 0 : i32
    %c0_i32_2 = arith.constant 0 : i32
    return %c0_i32, %c0_i32_0, %c0_i32_1 : i32, i32, i32
  }
  func.func @transform_3(%arg0: i32) -> (i32, i32, i32) {
    %c0_i32 = arith.constant 0 : i32
    %c0_i32_0 = arith.constant 0 : i32
    %c0_i32_1 = arith.constant 0 : i32
    %c0_i32_2 = arith.constant 0 : i32
    return %c0_i32, %c0_i32_0, %c0_i32_1 : i32, i32, i32
  }
  func.func @transform_4(%arg0: i32) -> (i32, i32) {
    %c0_i32 = arith.constant 0 : i32
    %c0_i32_0 = arith.constant 0 : i32
    return %arg0, %c0_i32 : i32, i32
  }
}

</mosaic_0001>

<llo_original>
// kernel: tpu_custom_call.1
$region0: #{tpu_custom_call.1}
  #allocation0 [shape = 'u32[]', space=smem, size = 0x4, offset = 0x4, fixed_abs, tag = 'smem constant byte address 0x4 - core index']
  #allocation1 [shape = 'u32[144,128]{1,0:T(1,128)}', space=vmem, size = 0x12000, scoped, tag = 'internal scratch']
  %s0 = inlined_call_operand.hbm [shape: f32[1024,128], index: 0, kind: input, shape index: {}]
  %s1 = inlined_call_operand.hbm [shape: f32[1024,128], index: 1, kind: input, shape index: {}]
  %s2 = inlined_call_operand.hbm [shape: bf16[8,128,128], index: 2, kind: input, shape index: {}]
  %s3 = inlined_call_operand.vmem [shape: f32[8,1,128], index: 3, kind: input, shape index: {}]
  %s4 = inlined_call_operand.hbm [shape: f32[1024,128], index: 4, kind: output, shape index: {}]
  %s5 = sld [smem:[#allocation0]]
  $region61: #{tpu_custom_call.1} parent=0
    _
  %s7 = ssub.s32 1, %s5
  %s8 = scalar_select 0, %s7, %s5
  $region1: #{tpu_custom_call.1} parent=0
    #allocation2 [shape = 'u8[262144]{0}', space=vmem, size = 0x40000, scoped, tag = 'input window, operand 0']
    #allocation3 [shape = 's32[2]{0}', space=sflag, size = 0x8, scoped, tag = 'scoped memory for tpu_custom_call.1']
    #allocation4 [shape = 's32[2]{0}', space=sflag, size = 0x8, scoped, tag = 'scoped memory for tpu_custom_call.1']
    #allocation5 [shape = 'u8[262144]{0}', space=vmem, size = 0x40000, scoped, tag = 'input window, operand 1']
    #allocation6 [shape = 's32[2]{0}', space=sflag, size = 0x8, scoped, tag = 'scoped memory for tpu_custom_call.1']
    #allocation7 [shape = 'u8[262144]{0}', space=vmem, size = 0x40000, scoped, tag = 'input window, operand 2, single buffered']
    #allocation8 [shape = 'u8[262144]{0}', space=vmem, size = 0x40000, scoped, tag = 'output window, operand 0']
    %9 = vsyncpa [#allocation3], 0
    %s10 = scalar_lea.sflag [#allocation3], 1
    %11 = vsyncpa %s10, 0
    %12 = vsyncpa [#allocation6], 0
    %s13 = scalar_lea.sflag [#allocation6], 1
    %14 = vsyncpa %s13, 0
    %15 = vsyncpa [#allocation4], 0
    %s16 = scalar_lea.sflag [#allocation4], 1
    %17 = vsyncpa %s16, 0
    loop: start=0, step=1, limit=6
    $region2: #{tpu_custom_call.1} parent=1 // loop_pre_header
      _
    $region3: #{tpu_custom_call.1} parent=1 // loop_header
      %s19 = sphi 0, %s23
      %p20 = scmp.ge.s32.totalorder %s19, 6
      %s29 = sphi 0, %s31
      %s32 = sphi 0, %s29
      %s33 = sphi 0, %s32
      %s49 = sphi 0, %s33
      %s55 = sphi 0, %s57
      %s58 = sphi 0, %s55
      %s59 = sphi 0, %s58
      %s75 = sphi 0, %s59
      %s79 = sphi 0, %s79
      %s81 = sphi 0, %s79
      %s82 = sphi 0, %s81
      %s96 = sphi 0, %s82
      %s100 = sphi 0, %s100
      %s102 = sphi 0, %s100
      %s103 = sphi 0, %s102
      %s117 = sphi 0, %s103
      %s123 = sphi 0, %s125
      %s126 = sphi 0, %s123
      %s127 = sphi 0, %s126
      %s143 = sphi 0, %s127
    $region4: #{tpu_custom_call.1} parent=1 // loop_header_branch
      %22 = sbr.rel (%p20) target = $region8
    $region5: #{tpu_custom_call.1} parent=1 // loop_body
      %s24 = ssub.s32 %s19, 1
      %s25 = ssub.s32 %s19, 2
      %s26 = sadd.s32 %s19, 1
      %s27 = ssub.s32 %s19, %s26
      %p28 = scmp.eq.s32.totalorder %s27, 0
      %s30 = sadd.s32 %s29, 1
      %s31 = scalar_select %p28, %s29, %s30
      %p34 = pneg %p28
      %p35 = scmp.eq.s32.totalorder %s19, 3
      %p36 = por %p34, %p35
      %p37 = scmp.ne.s32.totalorder %s29, %s32
      %p38 = scmp.eq.s32.totalorder %s19, 0
      %p39 = por %p37, %p38
      %p40 = scmp.ne.s32.totalorder %s29, %s32
      %p41 = scmp.eq.s32.totalorder %s24, 3
      %p42 = por %p40, %p41
      %p43 = scmp.ne.s32.totalorder %s32, %s33
      %p44 = scmp.eq.s32.totalorder %s24, 0
      %p45 = por %p43, %p44
      %p46 = scmp.ne.s32.totalorder %s32, %s33
      %p47 = scmp.eq.s32.totalorder %s25, 3
      %p48 = por %p46, %p47
      %p50 = scmp.ne.s32.totalorder %s33, %s49
      %p51 = scmp.eq.s32.totalorder %s25, 0
      %p52 = por %p50, %p51
      %s53 = ssub.s32 %s19, %s26
      %p54 = scmp.eq.s32.totalorder %s53, 0
      %s56 = sadd.s32 %s55, 1
      %s57 = scalar_select %p54, %s55, %s56
      %p60 = pneg %p54
      %p61 = scmp.eq.s32.totalorder %s19, 3
      %p62 = por %p60, %p61
      %p63 = scmp.ne.s32.totalorder %s55, %s58
      %p64 = scmp.eq.s32.totalorder %s19, 0
      %p65 = por %p63, %p64
      %p66 = scmp.ne.s32.totalorder %s55, %s58
      %p67 = scmp.eq.s32.totalorder %s24, 3
      %p68 = por %p66, %p67
      %p69 = scmp.ne.s32.totalorder %s58, %s59
      %p70 = scmp.eq.s32.totalorder %s24, 0
      %p71 = por %p69, %p70
      %p72 = scmp.ne.s32.totalorder %s58, %s59
      %p73 = scmp.eq.s32.totalorder %s25, 3
      %p74 = por %p72, %p73
      %p76 = scmp.ne.s32.totalorder %s59, %s75
      %p77 = scmp.eq.s32.totalorder %s25, 0
      %p78 = por %p76, %p77
      %s80 = sadd.s32 %s79, 1
      %p83 = scmp.eq.s32.totalorder %s19, 3
      %p84 = scmp.ne.s32.totalorder %s79, %s81
      %p85 = scmp.eq.s32.totalorder %s19, 0
      %p86 = por %p84, %p85
      %p87 = scmp.ne.s32.totalorder %s79, %s81
      %p88 = scmp.eq.s32.totalorder %s24, 3
      %p89 = por %p87, %p88
      %p90 = scmp.ne.s32.totalorder %s81, %s82
      %p91 = scmp.eq.s32.totalorder %s24, 0
      %p92 = por %p90, %p91
      %p93 = scmp.ne.s32.totalorder %s81, %s82
      %p94 = scmp.eq.s32.totalorder %s25, 3
      %p95 = por %p93, %p94
      %p97 = scmp.ne.s32.totalorder %s82, %s96
      %p98 = scmp.eq.s32.totalorder %s25, 0
      %p99 = por %p97, %p98
      %s101 = sadd.s32 %s100, 1
      %p104 = scmp.eq.s32.totalorder %s19, 3
      %p105 = scmp.ne.s32.totalorder %s100, %s102
      %p106 = scmp.eq.s32.totalorder %s19, 0
      %p107 = por %p105, %p106
      %p108 = scmp.ne.s32.totalorder %s100, %s102
      %p109 = scmp.eq.s32.totalorder %s24, 3
      %p110 = por %p108, %p109
      %p111 = scmp.ne.s32.totalorder %s102, %s103
      %p112 = scmp.eq.s32.totalorder %s24, 0
      %p113 = por %p111, %p112
      %p114 = scmp.ne.s32.totalorder %s102, %s103
      %p115 = scmp.eq.s32.totalorder %s25, 3
      %p116 = por %p114, %p115
      %p118 = scmp.ne.s32.totalorder %s103, %s117
      %p119 = scmp.eq.s32.totalorder %s25, 0
      %p120 = por %p118, %p119
      %s121 = ssub.s32 %s19, %s26
      %p122 = scmp.eq.s32.totalorder %s121, 0
      %s124 = sadd.s32 %s123, 1
      %s125 = scalar_select %p122, %s123, %s124
      %p128 = pneg %p122
      %p129 = scmp.eq.s32.totalorder %s19, 3
      %p130 = por %p128, %p129
      %p131 = scmp.ne.s32.totalorder %s123, %s126
      %p132 = scmp.eq.s32.totalorder %s19, 0
      %p133 = por %p131, %p132
      %p134 = scmp.ne.s32.totalorder %s123, %s126
      %p135 = scmp.eq.s32.totalorder %s24, 3
      %p136 = por %p134, %p135
      %p137 = scmp.ne.s32.totalorder %s126, %s127
      %p138 = scmp.eq.s32.totalorder %s24, 0
      %p139 = por %p137, %p138
      %p140 = scmp.ne.s32.totalorder %s126, %s127
      %p141 = scmp.eq.s32.totalorder %s25, 3
      %p142 = por %p140, %p141
      %p144 = scmp.ne.s32.totalorder %s127, %s143
      %p145 = scmp.eq.s32.totalorder %s25, 0
      %p146 = por %p144, %p145
      %p147 = scmp.le.s32.totalorder 1, %s19
      %p148 = scmp.lt.s32.totalorder %s19, 5
      %p149 = pnand %p147, %p148
      %p150 = pneg %p149
      // Predicated region
      $region9: #{tpu_custom_call.1} parent=5 // pred_check
        _
      $region10: #{tpu_custom_call.1} parent=5 // pred_check_branch
        %152 = sbr.rel (%p149) target = $region12
      $region11: #{tpu_custom_call.1} parent=5 // pred_region
        %s153 = ssub.s32 %s19, 1
        // Predicated region
        $region13: #{tpu_custom_call.1} parent=11 // pred_check
          %p154 = pneg %p92
        $region14: #{tpu_custom_call.1} parent=11 // pred_check_branch
          %156 = sbr.rel (%p154) target = $region16
        $region15: #{tpu_custom_call.1} parent=11 // pred_region
          %s158 = ssub.s32 8192, 8192
          %159 = vsyncadd [#allocation6], %s158
          %s160 = sshll.u32 [#allocation7], 4
          %s161 = int_to_ptr.vmem [resolvable:$true] %s160
          %166 = dma.hbm_to_vmem [thread:$0]  %s2, 8192, %s161, [#allocation6], 64, 64, 4
        $region16: #{tpu_custom_call.1} parent=11 // pred_fallthru
          _
        // Predicated region
        $region17: #{tpu_custom_call.1} parent=11 // pred_check
          %p167 = pneg %p113
        $region18: #{tpu_custom_call.1} parent=11 // pred_check_branch
          %169 = sbr.rel (%p167) target = $region20
        $region19: #{tpu_custom_call.1} parent=11 // pred_region
          _
        $region20: #{tpu_custom_call.1} parent=11 // pred_fallthru
          _
      $region12: #{tpu_custom_call.1} parent=5 // pred_fallthru
        _
      %p170 = scmp.lt.s32.totalorder %s19, 4
      // Predicated region
      $region21: #{tpu_custom_call.1} parent=5 // pred_check
        %p171 = pneg %p170
      $region22: #{tpu_custom_call.1} parent=5 // pred_check_branch
        %173 = sbr.rel (%p171) target = $region24
      $region23: #{tpu_custom_call.1} parent=5 // pred_region
        // Predicated region
        $region25: #{tpu_custom_call.1} parent=23 // pred_check
          %p174 = pneg %p39
        $region26: #{tpu_custom_call.1} parent=23 // pred_check_branch
          %176 = sbr.rel (%p174) target = $region28
        $region27: #{tpu_custom_call.1} parent=23 // pred_region
          %s177 = sand.u32 %s29, 1
          %s178 = scalar_lea.sflag [#allocation3], %s177
          %s179 = sand.u32 %s29, 1
          %s180 = smul.addr %s179, 256
          %s181 = scalar_lea.vmem [#allocation2], %s180
          %s182 = smul.u32 32, %s19
          %s184 = ssub.s32 4096, 4096
          %185 = vsyncadd %s178, %s184
          %s186 = smul.addr %s182, 128
          %s187 = scalar_lea.hbm %s0, %s186
          %s188 = sshll.u32 %s181, 4
          %s189 = int_to_ptr.vmem [resolvable:$true] %s188
          %194 = dma.hbm_to_vmem [thread:$0]  %s187, 4096, %s189, %s178, 128, 128, 8
        $region28: #{tpu_custom_call.1} parent=23 // pred_fallthru
          _
        // Predicated region
        $region29: #{tpu_custom_call.1} parent=23 // pred_check
          %p195 = pneg %p65
        $region30: #{tpu_custom_call.1} parent=23 // pred_check_branch
          %197 = sbr.rel (%p195) target = $region32
        $region31: #{tpu_custom_call.1} parent=23 // pred_region
          %s198 = sand.u32 %s19, 1
          %s199 = scalar_lea.sflag [#allocation6], %s198
          %s200 = sand.u32 %s55, 1
          %s201 = smul.addr %s200, 256
          %s202 = scalar_lea.vmem [#allocation5], %s201
          %s203 = smul.u32 32, %s19
          %s205 = ssub.s32 4096, 4096
          %206 = vsyncadd %s199, %s205
          %s207 = smul.addr %s203, 128
          %s208 = scalar_lea.hbm %s1, %s207
          %s209 = sshll.u32 %s202, 4
          %s210 = int_to_ptr.vmem [resolvable:$true] %s209
          %215 = dma.hbm_to_vmem [thread:$0]  %s208, 4096, %s210, %s199, 128, 128, 8
        $region32: #{tpu_custom_call.1} parent=23 // pred_fallthru
          _
      $region24: #{tpu_custom_call.1} parent=5 // pred_fallthru
        _
      %p216 = scmp.le.s32.totalorder 1, %s19
      %p217 = scmp.lt.s32.totalorder %s19, 5
      %p218 = pnand %p216, %p217
      %p219 = pneg %p218
      // Predicated region
      $region33: #{tpu_custom_call.1} parent=5 // pred_check
        _
      $region34: #{tpu_custom_call.1} parent=5 // pred_check_branch
        %221 = sbr.rel (%p218) target = $region36
      $region35: #{tpu_custom_call.1} parent=5 // pred_region
        %s222 = ssub.s32 %s19, 1
        %s223 = sand.u32 %s32, 1
        %s224 = scalar_lea.sflag [#allocation3], %s223
        %s225 = sand.u32 %s32, 1
        %s226 = smul.addr %s225, 256
        %s227 = scalar_lea.vmem [#allocation2], %s226
        // Predicated region
        $region37: #{tpu_custom_call.1} parent=35 // pred_check
          %p228 = pneg %p45
        $region38: #{tpu_custom_call.1} parent=35 // pred_check_branch
          %230 = sbr.rel (%p228) target = $region40
        $region39: #{tpu_custom_call.1} parent=35 // pred_region
          %231 = dma.done %s224, 4096
        $region40: #{tpu_custom_call.1} parent=35 // pred_fallthru
          _
        %s232 = sand.u32 %s24, 1
        %s233 = scalar_lea.sflag [#allocation6], %s232
        %s234 = sand.u32 %s58, 1
        %s235 = smul.addr %s234, 256
        %s236 = scalar_lea.vmem [#allocation5], %s235
        // Predicated region
        $region41: #{tpu_custom_call.1} parent=35 // pred_check
          %p237 = pneg %p71
        $region42: #{tpu_custom_call.1} parent=35 // pred_check_branch
          %239 = sbr.rel (%p237) target = $region44
        $region43: #{tpu_custom_call.1} parent=35 // pred_region
          %240 = dma.done %s233, 4096
        $region44: #{tpu_custom_call.1} parent=35 // pred_fallthru
          _
        // Predicated region
        $region45: #{tpu_custom_call.1} parent=35 // pred_check
          %p241 = pneg %p92
        $region46: #{tpu_custom_call.1} parent=35 // pred_check_branch
          %243 = sbr.rel (%p241) target = $region48
        $region47: #{tpu_custom_call.1} parent=35 // pred_region
          %244 = dma.done [#allocation6], 8192
        $region48: #{tpu_custom_call.1} parent=35 // pred_fallthru
          _
        %s245 = sand.u32 %s32, 1
        %s246 = scalar_lea.sflag [#allocation3], %s245
        %s247 = sand.u32 %s32, 1
        %s248 = smul.addr %s247, 256
        %s249 = scalar_lea.vmem [#allocation2], %s248
        %p250 = pneg %p45
        %p251 = pneg %p42
        %s252 = sand.u32 %s24, 1
        %s253 = scalar_lea.sflag [#allocation6], %s252
        %s254 = sand.u32 %s58, 1
        %s255 = smul.addr %s254, 256
        %s256 = scalar_lea.vmem [#allocation5], %s255
        %p257 = pneg %p71
        %p258 = pneg %p68
        %p259 = pneg %p92
        %p260 = pneg %p89
        %p261 = pneg %p113
        %p262 = pneg %p110
        %p263 = pneg %p139
        %p264 = pneg %p136
        %s265 = sand.u32 %s126, 1
        %s266 = scalar_lea.sflag [#allocation4], %s265
        %s267 = sand.u32 %s126, 1
        %s268 = smul.addr %s267, 256
        %s269 = scalar_lea.vmem [#allocation8], %s268
        %s270 = smul.u32 32, %s24
        %s271 = smul.u32 32, %s24
        %s272 = smul.u32 32, %s24
        %v274 = vld [vmem:[%s227] sm:$0xff]
        %v275 = vld [vmem:[%s227 + $0x8] sm:$0xff]
        %v276 = vld [vmem:[%s227 + $0x10] sm:$0xff]
        %v277 = vld [vmem:[%s227 + $0x18] sm:$0xff]
        %v278 = vld [vmem:[%s227 + $0x20] sm:$0xff]
        %v279 = vld [vmem:[%s227 + $0x28] sm:$0xff]
        %v280 = vld [vmem:[%s227 + $0x30] sm:$0xff]
        %v281 = vld [vmem:[%s227 + $0x38] sm:$0xff]
        %v282 = vld [vmem:[%s227 + $0x40] sm:$0xff]
        %v283 = vld [vmem:[%s227 + $0x48] sm:$0xff]
        %v284 = vld [vmem:[%s227 + $0x50] sm:$0xff]
        %v285 = vld [vmem:[%s227 + $0x58] sm:$0xff]
        %v286 = vld [vmem:[%s227 + $0x60] sm:$0xff]
        %v287 = vld [vmem:[%s227 + $0x68] sm:$0xff]
        %v288 = vld [vmem:[%s227 + $0x70] sm:$0xff]
        %v289 = vld [vmem:[%s227 + $0x78] sm:$0xff]
        %v290 = vld [vmem:[%s227 + $0x80] sm:$0xff]
        %v291 = vld [vmem:[%s227 + $0x88] sm:$0xff]
        %v292 = vld [vmem:[%s227 + $0x90] sm:$0xff]
        %v293 = vld [vmem:[%s227 + $0x98] sm:$0xff]
        %v294 = vld [vmem:[%s227 + $0xa0] sm:$0xff]
        %v295 = vld [vmem:[%s227 + $0xa8] sm:$0xff]
        %v296 = vld [vmem:[%s227 + $0xb0] sm:$0xff]
        %v297 = vld [vmem:[%s227 + $0xb8] sm:$0xff]
        %v298 = vld [vmem:[%s227 + $0xc0] sm:$0xff]
        %v299 = vld [vmem:[%s227 + $0xc8] sm:$0xff]
        %v300 = vld [vmem:[%s227 + $0xd0] sm:$0xff]
        %v301 = vld [vmem:[%s227 + $0xd8] sm:$0xff]
        %v302 = vld [vmem:[%s227 + $0xe0] sm:$0xff]
        %v303 = vld [vmem:[%s227 + $0xe8] sm:$0xff]
        %v304 = vld [vmem:[%s227 + $0xf0] sm:$0xff]
        %v305 = vld [vmem:[%s227 + $0xf8] sm:$0xff]
        %v306 = vpack.c.bf16 %v275, %v274
        %v307 = vpack.c.bf16 %v277, %v276
        %v308 = vpack.c.bf16 %v279, %v278
        %v309 = vpack.c.bf16 %v281, %v280
        %v310 = vpack.c.bf16 %v283, %v282
        %v311 = vpack.c.bf16 %v285, %v284
        %v312 = vpack.c.bf16 %v287, %v286
        %v313 = vpack.c.bf16 %v289, %v288
        %v314 = vpack.c.bf16 %v291, %v290
        %v315 = vpack.c.bf16 %v293, %v292
        %v316 = vpack.c.bf16 %v295, %v294
        %v317 = vpack.c.bf16 %v297, %v296
        %v318 = vpack.c.bf16 %v299, %v298
        %v319 = vpack.c.bf16 %v301, %v300
        %v320 = vpack.c.bf16 %v303, %v302
        %v321 = vpack.c.bf16 %v305, %v304
        %v322 = vld [vmem:[#allocation7] sm:$0xf]
        %v323 = vld [vmem:[#allocation7 + $0x4] sm:$0xf]
        %v324 = vld [vmem:[#allocation7 + $0x8] sm:$0xf]
        %v325 = vld [vmem:[#allocation7 + $0xc] sm:$0xf]
        %v326 = vld [vmem:[#allocation7 + $0x10] sm:$0xf]
        %v327 = vld [vmem:[#allocation7 + $0x14] sm:$0xf]
        %v328 = vld [vmem:[#allocation7 + $0x18] sm:$0xf]
        %v329 = vld [vmem:[#allocation7 + $0x1c] sm:$0xf]
        %v330 = vld [vmem:[#allocation7 + $0x20] sm:$0xf]
        %v331 = vld [vmem:[#allocation7 + $0x24] sm:$0xf]
        %v332 = vld [vmem:[#allocation7 + $0x28] sm:$0xf]
        %v333 = vld [vmem:[#allocation7 + $0x2c] sm:$0xf]
        %v334 = vld [vmem:[#allocation7 + $0x30] sm:$0xf]
        %v335 = vld [vmem:[#allocation7 + $0x34] sm:$0xf]
        %v336 = vld [vmem:[#allocation7 + $0x38] sm:$0xf]
        %v337 = vld [vmem:[#allocation7 + $0x3c] sm:$0xf]
        %v338 = vld [vmem:[%s3] sm:$0x1]
        %v340 = vlaneseq
        %v341 = vshrl.u32 %v340, 7
        %v342 = vsub.s32 0, %v341
        %v343 = vrot.slane %v338, %v342
        %v361 = vunpack.c.l.b16 %v322
        %v362 = vunpack.c.l.b16 %v323
        %v363 = vunpack.c.l.b16 %v324
        %v364 = vunpack.c.l.b16 %v325
        %v365 = vunpack.c.l.b16 %v326
        %v366 = vunpack.c.l.b16 %v327
        %v367 = vunpack.c.l.b16 %v328
        %v368 = vunpack.c.l.b16 %v329
        %v369 = vunpack.c.l.b16 %v330
        %v370 = vunpack.c.l.b16 %v331
        %v371 = vunpack.c.l.b16 %v332
        %v372 = vunpack.c.l.b16 %v333
        %v373 = vunpack.c.l.b16 %v334
        %v374 = vunpack.c.l.b16 %v335
        %v375 = vunpack.c.l.b16 %v336
        %v376 = vunpack.c.l.b16 %v337
        %v377 = vpack.c.b16 %v362, %v361
        %v378 = vpack.c.b16 %v364, %v363
        %v379 = vpack.c.b16 %v366, %v365
        %v380 = vpack.c.b16 %v368, %v367
        %v381 = vpack.c.b16 %v370, %v369
        %v382 = vpack.c.b16 %v372, %v371
        %v383 = vpack.c.b16 %v374, %v373
        %v384 = vpack.c.b16 %v376, %v375
        %393 = vmatprep.subr.bf16.mxu0 0
        %394 = vmatpush1.bf16.msra.mxu0 %v377
        %395 = vmatprep.subr.bf16.mxu0 0
        %396 = vmatpush1.bf16.msra.mxu0 %v378
        %397 = vmatprep.subr.bf16.mxu0 0
        %398 = vmatpush1.bf16.msra.mxu0 %v379
        %399 = vmatprep.subr.bf16.mxu0 0
        %400 = vmatpush1.bf16.msra.mxu0 %v380
        %401 = vmatprep.subr.bf16.mxu0 0
        %402 = vmatpush1.bf16.msra.mxu0 %v381
        %403 = vmatprep.subr.bf16.mxu0 0
        %404 = vmatpush1.bf16.msra.mxu0 %v382
        %405 = vmatprep.subr.bf16.mxu0 0
        %406 = vmatpush1.bf16.msra.mxu0 %v383
        %407 = vmatprep.subr.bf16.mxu0 0
        %408 = vmatpush1.bf16.msra.mxu0 %v384
        %409 = vmatprep.subr.bf16.mxu0 0
        %410 = vmatpush1.bf16.msra.mxu0 0
        %411 = vmatprep.subr.bf16.mxu0 0
        %412 = vmatpush1.bf16.msra.mxu0 0
        %413 = vmatprep.subr.bf16.mxu0 0
        %414 = vmatpush1.bf16.msra.mxu0 0
        %415 = vmatprep.subr.bf16.mxu0 0
        %416 = vmatpush1.bf16.msra.mxu0 0
        %417 = vmatprep.subr.bf16.mxu0 0
        %418 = vmatpush1.bf16.msra.mxu0 0
        %419 = vmatprep.subr.bf16.mxu0 0
        %420 = vmatpush1.bf16.msra.mxu0 0
        %421 = vmatprep.subr.bf16.mxu0 0
        %422 = vmatpush1.bf16.msra.mxu0 0
        %423 = vmatprep.subr.bf16.mxu0 0
        %424 = vmatpush1.bf16.msra.mxu0 0
        %425 = vmatprep.mubr.bf16.mxu0 0
        %426 = vmatmul.mubr.bf16.gmra.mrb[0].mxu0 %v306
        %v427 = vpop.f32.mrb[0].mxu0
        %v428 = vadd.f32 %v343, %v427
        %v429 = vpop.f32.mrb[0].mxu0
        %v430 = vpop.f32.mrb[0].mxu0
        %v431 = vadd.f32 %v343, %v430
        %v432 = vpop.f32.mrb[0].mxu0
        %433 = vmatprep.mubr.bf16.mxu0 0
        %434 = vmatmul.mubr.bf16.gmra.mrb[0].mxu0 %v307
        %v435 = vpop.f32.mrb[0].mxu0
        %v436 = vadd.f32 %v343, %v435
        %v437 = vpop.f32.mrb[0].mxu0
        %v438 = vpop.f32.mrb[0].mxu0
        %v439 = vadd.f32 %v343, %v438
        %v440 = vpop.f32.mrb[0].mxu0
        %441 = vmatprep.mubr.bf16.mxu0 0
        %442 = vmatmul.mubr.bf16.gmra.mrb[0].mxu0 %v308
        %v443 = vpop.f32.mrb[0].mxu0
        %v444 = vadd.f32 %v343, %v443
        %v445 = vpop.f32.mrb[0].mxu0
        %v446 = vpop.f32.mrb[0].mxu0
        %v447 = vadd.f32 %v343, %v446
        %v448 = vpop.f32.mrb[0].mxu0
        %449 = vmatprep.mubr.bf16.mxu0 0
        %450 = vmatmul.mubr.bf16.gmra.mrb[0].mxu0 %v309
        %v451 = vpop.f32.mrb[0].mxu0
        %v452 = vadd.f32 %v343, %v451
        %v453 = vpop.f32.mrb[0].mxu0
        %v454 = vpop.f32.mrb[0].mxu0
        %v455 = vadd.f32 %v343, %v454
        %v456 = vpop.f32.mrb[0].mxu0
        %457 = vmatprep.mubr.bf16.mxu0 0
        %458 = vmatmul.mubr.bf16.gmra.mrb[0].mxu0 %v310
        %v459 = vpop.f32.mrb[0].mxu0
        %v460 = vadd.f32 %v343, %v459
        %v461 = vpop.f32.mrb[0].mxu0
        %v462 = vpop.f32.mrb[0].mxu0
        %v463 = vadd.f32 %v343, %v462
        %v464 = vpop.f32.mrb[0].mxu0
        %465 = vmatprep.mubr.bf16.mxu0 0
        %466 = vmatmul.mubr.bf16.gmra.mrb[0].mxu0 %v311
        %v467 = vpop.f32.mrb[0].mxu0
        %v468 = vadd.f32 %v343, %v467
        %v469 = vpop.f32.mrb[0].mxu0
        %v470 = vpop.f32.mrb[0].mxu0
        %v471 = vadd.f32 %v343, %v470
        %v472 = vpop.f32.mrb[0].mxu0
        %473 = vmatprep.mubr.bf16.mxu0 0
        %474 = vmatmul.mubr.bf16.gmra.mrb[0].mxu0 %v312
        %v475 = vpop.f32.mrb[0].mxu0
        %v476 = vadd.f32 %v343, %v475
        %v477 = vpop.f32.mrb[0].mxu0
        %v478 = vpop.f32.mrb[0].mxu0
        %v479 = vadd.f32 %v343, %v478
        %v480 = vpop.f32.mrb[0].mxu0
        %481 = vmatprep.mubr.bf16.mxu0 0
        %482 = vmatmul.mubr.bf16.gmra.mrb[0].mxu0 %v313
        %v483 = vpop.f32.mrb[0].mxu0
        %v484 = vadd.f32 %v343, %v483
        %v485 = vpop.f32.mrb[0].mxu0
        %v486 = vpop.f32.mrb[0].mxu0
        %v487 = vadd.f32 %v343, %v486
        %v488 = vpop.f32.mrb[0].mxu0
        %489 = vmatprep.mubr.bf16.mxu0 0
        %490 = vmatmul.mubr.bf16.gmra.mrb[0].mxu0 %v314
        %v491 = vpop.f32.mrb[0].mxu0
        %v492 = vadd.f32 %v343, %v491
        %v493 = vpop.f32.mrb[0].mxu0
        %v494 = vpop.f32.mrb[0].mxu0
        %v495 = vadd.f32 %v343, %v494
        %v496 = vpop.f32.mrb[0].mxu0
        %497 = vmatprep.mubr.bf16.mxu0 0
        %498 = vmatmul.mubr.bf16.gmra.mrb[0].mxu0 %v315
        %v499 = vpop.f32.mrb[0].mxu0
        %v500 = vadd.f32 %v343, %v499
        %v501 = vpop.f32.mrb[0].mxu0
        %v502 = vpop.f32.mrb[0].mxu0
        %v503 = vadd.f32 %v343, %v502
        %v504 = vpop.f32.mrb[0].mxu0
        %505 = vmatprep.mubr.bf16.mxu0 0
        %506 = vmatmul.mubr.bf16.gmra.mrb[0].mxu0 %v316
        %v507 = vpop.f32.mrb[0].mxu0
        %v508 = vadd.f32 %v343, %v507
        %v509 = vpop.f32.mrb[0].mxu0
        %v510 = vpop.f32.mrb[0].mxu0
        %v511 = vadd.f32 %v343, %v510
        %v512 = vpop.f32.mrb[0].mxu0
        %513 = vmatprep.mubr.bf16.mxu0 0
        %514 = vmatmul.mubr.bf16.gmra.mrb[0].mxu0 %v317
        %v515 = vpop.f32.mrb[0].mxu0
        %v516 = vadd.f32 %v343, %v515
        %v517 = vpop.f32.mrb[0].mxu0
        %v518 = vpop.f32.mrb[0].mxu0
        %v519 = vadd.f32 %v343, %v518
        %v520 = vpop.f32.mrb[0].mxu0
        %521 = vmatprep.mubr.bf16.mxu0 0
        %522 = vmatmul.mubr.bf16.gmra.mrb[0].mxu0 %v318
        %v523 = vpop.f32.mrb[0].mxu0
        %v524 = vadd.f32 %v343, %v523
        %v525 = vpop.f32.mrb[0].mxu0
        %v526 = vpop.f32.mrb[0].mxu0
        %v527 = vadd.f32 %v343, %v526
        %v528 = vpop.f32.mrb[0].mxu0
        %529 = vmatprep.mubr.bf16.mxu0 0
        %530 = vmatmul.mubr.bf16.gmra.mrb[0].mxu0 %v319
        %v531 = vpop.f32.mrb[0].mxu0
        %v532 = vadd.f32 %v343, %v531
        %v533 = vpop.f32.mrb[0].mxu0
        %v534 = vpop.f32.mrb[0].mxu0
        %v535 = vadd.f32 %v343, %v534
        %v536 = vpop.f32.mrb[0].mxu0
        %537 = vmatprep.mubr.bf16.mxu0 0
        %538 = vmatmul.mubr.bf16.gmra.mrb[0].mxu0 %v320
        %v539 = vpop.f32.mrb[0].mxu0
        %v540 = vadd.f32 %v343, %v539
        %v541 = vpop.f32.mrb[0].mxu0
        %v542 = vpop.f32.mrb[0].mxu0
        %v543 = vadd.f32 %v343, %v542
        %v544 = vpop.f32.mrb[0].mxu0
        %545 = vmatprep.mubr.bf16.mxu0 0
        %546 = vmatmul.mubr.bf16.gmra.mrb[0].mxu0 %v321
        %v547 = vpop.f32.mrb[0].mxu0
        %v548 = vadd.f32 %v343, %v547
        %v549 = vpop.f32.mrb[0].mxu0
        %v550 = vpop.f32.mrb[0].mxu0
        %v551 = vadd.f32 %v343, %v550
        %v552 = vpop.f32.mrb[0].mxu0
        %553 = vdwg.mxu0
        %v554 = vmax.f32 %v428, 0.0
        %v555 = vmax.f32 %v431, 0.0
        %v556 = vmax.f32 %v436, 0.0
        %v557 = vmax.f32 %v439, 0.0
        %v558 = vmax.f32 %v444, 0.0
        %v559 = vmax.f32 %v447, 0.0
        %v560 = vmax.f32 %v452, 0.0
        %v561 = vmax.f32 %v455, 0.0
        %v562 = vmax.f32 %v460, 0.0
        %v563 = vmax.f32 %v463, 0.0
        %v564 = vmax.f32 %v468, 0.0
        %v565 = vmax.f32 %v471, 0.0
        %v566 = vmax.f32 %v476, 0.0
        %v567 = vmax.f32 %v479, 0.0
        %v568 = vmax.f32 %v484, 0.0
        %v569 = vmax.f32 %v487, 0.0
        %v570 = vmax.f32 %v492, 0.0
        %v571 = vmax.f32 %v495, 0.0
        %v572 = vmax.f32 %v500, 0.0
        %v573 = vmax.f32 %v503, 0.0
        %v574 = vmax.f32 %v508, 0.0
        %v575 = vmax.f32 %v511, 0.0
        %v576 = vmax.f32 %v516, 0.0
        %v577 = vmax.f32 %v519, 0.0
        %v578 = vmax.f32 %v524, 0.0
        %v579 = vmax.f32 %v527, 0.0
        %v580 = vmax.f32 %v532, 0.0
        %v581 = vmax.f32 %v535, 0.0
        %v582 = vmax.f32 %v540, 0.0
        %v583 = vmax.f32 %v543, 0.0
        %v584 = vmax.f32 %v548, 0.0
        %v585 = vmax.f32 %v551, 0.0
        %v586 = vpack.c.bf16 %v555, %v554
        %v587 = vpack.c.bf16 %v557, %v556
        %v588 = vpack.c.bf16 %v559, %v558
        %v589 = vpack.c.bf16 %v561, %v560
        %v590 = vpack.c.bf16 %v563, %v562
        %v591 = vpack.c.bf16 %v565, %v564
        %v592 = vpack.c.bf16 %v567, %v566
        %v593 = vpack.c.bf16 %v569, %v568
        %v594 = vpack.c.bf16 %v571, %v570
        %v595 = vpack.c.bf16 %v573, %v572
        %v596 = vpack.c.bf16 %v575, %v574
        %v597 = vpack.c.bf16 %v577, %v576
        %v598 = vpack.c.bf16 %v579, %v578
        %v599 = vpack.c.bf16 %v581, %v580
        %v600 = vpack.c.bf16 %v583, %v582
        %v601 = vpack.c.bf16 %v585, %v584
        %s602 = scalar_lea.vmem [#allocation7], 64
        %v603 = vld [vmem:[%s602] sm:$0xf]
        %v604 = vld [vmem:[%s602 + $0x4] sm:$0xf]
        %v605 = vld [vmem:[%s602 + $0x8] sm:$0xf]
        %v606 = vld [vmem:[%s602 + $0xc] sm:$0xf]
        %v607 = vld [vmem:[%s602 + $0x10] sm:$0xf]
        %v608 = vld [vmem:[%s602 + $0x14] sm:$0xf]
        %v609 = vld [vmem:[%s602 + $0x18] sm:$0xf]
        %v610 = vld [vmem:[%s602 + $0x1c] sm:$0xf]
        %v611 = vld [vmem:[%s602 + $0x20] sm:$0xf]
        %v612 = vld [vmem:[%s602 + $0x24] sm:$0xf]
        %v613 = vld [vmem:[%s602 + $0x28] sm:$0xf]
        %v614 = vld [vmem:[%s602 + $0x2c] sm:$0xf]
        %v615 = vld [vmem:[%s602 + $0x30] sm:$0xf]
        %v616 = vld [vmem:[%s602 + $0x34] sm:$0xf]
        %v617 = vld [vmem:[%s602 + $0x38] sm:$0xf]
        %v618 = vld [vmem:[%s602 + $0x3c] sm:$0xf]
        %s619 = scalar_lea.vmem %s3, 1
        %v620 = vld [vmem:[%s619] sm:$0x1]
        %v622 = vlaneseq
        %v623 = vshrl.u32 %v622, 7
        %v624 = vsub.s32 0, %v623
        %v625 = vrot.slane %v620, %v624
        %v643 = vunpack.c.l.b16 %v603
        %v644 = vunpack.c.l.b16 %v604
        %v645 = vunpack.c.l.b16 %v605
        %v646 = vunpack.c.l.b16 %v606
        %v647 = vunpack.c.l.b16 %v607
        %v648 = vunpack.c.l.b16 %v608
        %v649 = vunpack.c.l.b16 %v609
        %v650 = vunpack.c.l.b16 %v610
        %v651 = vunpack.c.l.b16 %v611
        %v652 = vunpack.c.l.b16 %v612
        %v653 = vunpack.c.l.b16 %v613
        %v654 = vunpack.c.l.b16 %v614
        %v655 = vunpack.c.l.b16 %v615
        %v656 = vunpack.c.l.b16 %v616
        %v657 = vunpack.c.l.b16 %v617
        %v658 = vunpack.c.l.b16 %v618
        %v659 = vpack.c.b16 %v644, %v643
        %v660 = vpack.c.b16 %v646, %v645
        %v661 = vpack.c.b16 %v648, %v647
        %v662 = vpack.c.b16 %v650, %v649
        %v663 = vpack.c.b16 %v652, %v651
        %v664 = vpack.c.b16 %v654, %v653
        %v665 = vpack.c.b16 %v656, %v655
        %v666 = vpack.c.b16 %v658, %v657
        %675 = vmatprep.subr.bf16.mxu0 0
        %676 = vmatpush1.bf16.msra.mxu0 %v659
        %677 = vmatprep.subr.bf16.mxu0 0
        %678 = vmatpush1.bf16.msra.mxu0 %v660
        %679 = vmatprep.subr.bf16.mxu0 0
        %680 = vmatpush1.bf16.msra.mxu0 %v661
        %681 = vmatprep.subr.bf16.mxu0 0
        %682 = vmatpush1.bf16.msra.mxu0 %v662
        %683 = vmatprep.subr.bf16.mxu0 0
        %684 = vmatpush1.bf16.msra.mxu0 %v663
        %685 = vmatprep.subr.bf16.mxu0 0
        %686 = vmatpush1.bf16.msra.mxu0 %v664
        %687 = vmatprep.subr.bf16.mxu0 0
        %688 = vmatpush1.bf16.msra.mxu0 %v665
        %689 = vmatprep.subr.bf16.mxu0 0
        %690 = vmatpush1.bf16.msra.mxu0 %v666
        %691 = vmatprep.subr.bf16.mxu0 0
        %692 = vmatpush1.bf16.msra.mxu0 0
        %693 = vmatprep.subr.bf16.mxu0 0
        %694 = vmatpush1.bf16.msra.mxu0 0
        %695 = vmatprep.subr.bf16.mxu0 0
        %696 = vmatpush1.bf16.msra.mxu0 0
        %697 = vmatprep.subr.bf16.mxu0 0
        %698 = vmatpush1.bf16.msra.mxu0 0
        %699 = vmatprep.subr.bf16.mxu0 0
        %700 = vmatpush1.bf16.msra.mxu0 0
        %701 = vmatprep.subr.bf16.mxu0 0
        %702 = vmatpush1.bf16.msra.mxu0 0
        %703 = vmatprep.subr.bf16.mxu0 0
        %704 = vmatpush1.bf16.msra.mxu0 0
        %705 = vmatprep.subr.bf16.mxu0 0
        %706 = vmatpush1.bf16.msra.mxu0 0
        %707 = vmatprep.mubr.bf16.mxu0 0
        %708 = vmatmul.mubr.bf16.gmra.mrb[0].mxu0 %v586
        %v709 = vpop.f32.mrb[0].mxu0
        %v710 = vadd.f32 %v625, %v709
        %v711 = vpop.f32.mrb[0].mxu0
        %v712 = vpop.f32.mrb[0].mxu0
        %v713 = vadd.f32 %v625, %v712
        %v714 = vpop.f32.mrb[0].mxu0
        %715 = vmatprep.mubr.bf16.mxu0 0
        %716 = vmatmul.mubr.bf16.gmra.mrb[0].mxu0 %v587
        %v717 = vpop.f32.mrb[0].mxu0
        %v718 = vadd.f32 %v625, %v717
        %v719 = vpop.f32.mrb[0].mxu0
        %v720 = vpop.f32.mrb[0].mxu0
        %v721 = vadd.f32 %v625, %v720
        %v722 = vpop.f32.mrb[0].mxu0
        %723 = vmatprep.mubr.bf16.mxu0 0
        %724 = vmatmul.mubr.bf16.gmra.mrb[0].mxu0 %v588
        %v725 = vpop.f32.mrb[0].mxu0
        %v726 = vadd.f32 %v625, %v725
        %v727 = vpop.f32.mrb[0].mxu0
        %v728 = vpop.f32.mrb[0].mxu0
        %v729 = vadd.f32 %v625, %v728
        %v730 = vpop.f32.mrb[0].mxu0
        %731 = vmatprep.mubr.bf16.mxu0 0
        %732 = vmatmul.mubr.bf16.gmra.mrb[0].mxu0 %v589
        %v733 = vpop.f32.mrb[0].mxu0
        %v734 = vadd.f32 %v625, %v733
        %v735 = vpop.f32.mrb[0].mxu0
        %v736 = vpop.f32.mrb[0].mxu0
        %v737 = vadd.f32 %v625, %v736
        %v738 = vpop.f32.mrb[0].mxu0
        %739 = vmatprep.mubr.bf16.mxu0 0
        %740 = vmatmul.mubr.bf16.gmra.mrb[0].mxu0 %v590
        %v741 = vpop.f32.mrb[0].mxu0
        %v742 = vadd.f32 %v625, %v741
        %v743 = vpop.f32.mrb[0].mxu0
        %v744 = vpop.f32.mrb[0].mxu0
        %v745 = vadd.f32 %v625, %v744
        %v746 = vpop.f32.mrb[0].mxu0
        %747 = vmatprep.mubr.bf16.mxu0 0
        %748 = vmatmul.mubr.bf16.gmra.mrb[0].mxu0 %v591
        %v749 = vpop.f32.mrb[0].mxu0
        %v750 = vadd.f32 %v625, %v749
        %v751 = vpop.f32.mrb[0].mxu0
        %v752 = vpop.f32.mrb[0].mxu0
        %v753 = vadd.f32 %v625, %v752
        %v754 = vpop.f32.mrb[0].mxu0
        %755 = vmatprep.mubr.bf16.mxu0 0
        %756 = vmatmul.mubr.bf16.gmra.mrb[0].mxu0 %v592
        %v757 = vpop.f32.mrb[0].mxu0
        %v758 = vadd.f32 %v625, %v757
        %v759 = vpop.f32.mrb[0].mxu0
        %v760 = vpop.f32.mrb[0].mxu0
        %v761 = vadd.f32 %v625, %v760
        %v762 = vpop.f32.mrb[0].mxu0
        %763 = vmatprep.mubr.bf16.mxu0 0
        %764 = vmatmul.mubr.bf16.gmra.mrb[0].mxu0 %v593
        %v765 = vpop.f32.mrb[0].mxu0
        %v766 = vadd.f32 %v625, %v765
        %v767 = vpop.f32.mrb[0].mxu0
        %v768 = vpop.f32.mrb[0].mxu0
        %v769 = vadd.f32 %v625, %v768
        %v770 = vpop.f32.mrb[0].mxu0
        %771 = vmatprep.mubr.bf16.mxu0 0
        %772 = vmatmul.mubr.bf16.gmra.mrb[0].mxu0 %v594
        %v773 = vpop.f32.mrb[0].mxu0
        %v774 = vadd.f32 %v625, %v773
        %v775 = vpop.f32.mrb[0].mxu0
        %v776 = vpop.f32.mrb[0].mxu0
        %v777 = vadd.f32 %v625, %v776
        %v778 = vpop.f32.mrb[0].mxu0
        %779 = vmatprep.mubr.bf16.mxu0 0
        %780 = vmatmul.mubr.bf16.gmra.mrb[0].mxu0 %v595
        %v781 = vpop.f32.mrb[0].mxu0
        %v782 = vadd.f32 %v625, %v781
        %v783 = vpop.f32.mrb[0].mxu0
        %v784 = vpop.f32.mrb[0].mxu0
        %v785 = vadd.f32 %v625, %v784
        %v786 = vpop.f32.mrb[0].mxu0
        %787 = vmatprep.mubr.bf16.mxu0 0
        %788 = vmatmul.mubr.bf16.gmra.mrb[0].mxu0 %v596
        %v789 = vpop.f32.mrb[0].mxu0
        %v790 = vadd.f32 %v625, %v789
        %v791 = vpop.f32.mrb[0].mxu0
        %v792 = vpop.f32.mrb[0].mxu0
        %v793 = vadd.f32 %v625, %v792
        %v794 = vpop.f32.mrb[0].mxu0
        %795 = vmatprep.mubr.bf16.mxu0 0
        %796 = vmatmul.mubr.bf16.gmra.mrb[0].mxu0 %v597
        %v797 = vpop.f32.mrb[0].mxu0
        %v798 = vadd.f32 %v625, %v797
        %v799 = vpop.f32.mrb[0].mxu0
        %v800 = vpop.f32.mrb[0].mxu0
        %v801 = vadd.f32 %v625, %v800
        %v802 = vpop.f32.mrb[0].mxu0
        %803 = vmatprep.mubr.bf16.mxu0 0
        %804 = vmatmul.mubr.bf16.gmra.mrb[0].mxu0 %v598
        %v805 = vpop.f32.mrb[0].mxu0
        %v806 = vadd.f32 %v625, %v805
        %v807 = vpop.f32.mrb[0].mxu0
        %v808 = vpop.f32.mrb[0].mxu0
        %v809 = vadd.f32 %v625, %v808
        %v810 = vpop.f32.mrb[0].mxu0
        %811 = vmatprep.mubr.bf16.mxu0 0
        %812 = vmatmul.mubr.bf16.gmra.mrb[0].mxu0 %v599
        %v813 = vpop.f32.mrb[0].mxu0
        %v814 = vadd.f32 %v625, %v813
        %v815 = vpop.f32.mrb[0].mxu0
        %v816 = vpop.f32.mrb[0].mxu0
        %v817 = vadd.f32 %v625, %v816
        %v818 = vpop.f32.mrb[0].mxu0
        %819 = vmatprep.mubr.bf16.mxu0 0
        %820 = vmatmul.mubr.bf16.gmra.mrb[0].mxu0 %v600
        %v821 = vpop.f32.mrb[0].mxu0
        %v822 = vadd.f32 %v625, %v821
        %v823 = vpop.f32.mrb[0].mxu0
        %v824 = vpop.f32.mrb[0].mxu0
        %v825 = vadd.f32 %v625, %v824
        %v826 = vpop.f32.mrb[0].mxu0
        %827 = vmatprep.mubr.bf16.mxu0 0
        %828 = vmatmul.mubr.bf16.gmra.mrb[0].mxu0 %v601
        %v829 = vpop.f32.mrb[0].mxu0
        %v830 = vadd.f32 %v625, %v829
        %v831 = vpop.f32.mrb[0].mxu0
        %v832 = vpop.f32.mrb[0].mxu0
        %v833 = vadd.f32 %v625, %v832
        %v834 = vpop.f32.mrb[0].mxu0
        %835 = vdwg.mxu0
        %v836 = vmax.f32 %v710, 0.0
        %v837 = vmax.f32 %v713, 0.0
        %v838 = vmax.f32 %v718, 0.0
        %v839 = vmax.f32 %v721, 0.0
        %v840 = vmax.f32 %v726, 0.0
        %v841 = vmax.f32 %v729, 0.0
        %v842 = vmax.f32 %v734, 0.0
        %v843 = vmax.f32 %v737, 0.0
        %v844 = vmax.f32 %v742, 0.0
        %v845 = vmax.f32 %v745, 0.0
        %v846 = vmax.f32 %v750, 0.0
        %v847 = vmax.f32 %v753, 0.0
        %v848 = vmax.f32 %v758, 0.0
        %v849 = vmax.f32 %v761, 0.0
        %v850 = vmax.f32 %v766, 0.0
        %v851 = vmax.f32 %v769, 0.0
        %v852 = vmax.f32 %v774, 0.0
        %v853 = vmax.f32 %v777, 0.0
        %v854 = vmax.f32 %v782, 0.0
        %v855 = vmax.f32 %v785, 0.0
        %v856 = vmax.f32 %v790, 0.0
        %v857 = vmax.f32 %v793, 0.0
        %v858 = vmax.f32 %v798, 0.0
        %v859 = vmax.f32 %v801, 0.0
        %v860 = vmax.f32 %v806, 0.0
        %v861 = vmax.f32 %v809, 0.0
        %v862 = vmax.f32 %v814, 0.0
        %v863 = vmax.f32 %v817, 0.0
        %v864 = vmax.f32 %v822, 0.0
        %v865 = vmax.f32 %v825, 0.0
        %v866 = vmax.f32 %v830, 0.0
        %v867 = vmax.f32 %v833, 0.0
        %v868 = vpack.c.bf16 %v837, %v836
        %v869 = vpack.c.bf16 %v839, %v838
        %v870 = vpack.c.bf16 %v841, %v840
        %v871 = vpack.c.bf16 %v843, %v842
        %v872 = vpack.c.bf16 %v845, %v844
        %v873 = vpack.c.bf16 %v847, %v846
        %v874 = vpack.c.bf16 %v849, %v848
        %v875 = vpack.c.bf16 %v851, %v850
        %v876 = vpack.c.bf16 %v853, %v852
        %v877 = vpack.c.bf16 %v855, %v854
        %v878 = vpack.c.bf16 %v857, %v856
        %v879 = vpack.c.bf16 %v859, %v858
        %v880 = vpack.c.bf16 %v861, %v860
        %v881 = vpack.c.bf16 %v863, %v862
        %v882 = vpack.c.bf16 %v865, %v864
        %v883 = vpack.c.bf16 %v867, %v866
        %s884 = scalar_lea.vmem [#allocation7], 128
        %v885 = vld [vmem:[%s884] sm:$0xf]
        %v886 = vld [vmem:[%s884 + $0x4] sm:$0xf]
        %v887 = vld [vmem:[%s884 + $0x8] sm:$0xf]
        %v888 = vld [vmem:[%s884 + $0xc] sm:$0xf]
        %v889 = vld [vmem:[%s884 + $0x10] sm:$0xf]
        %v890 = vld [vmem:[%s884 + $0x14] sm:$0xf]
        %v891 = vld [vmem:[%s884 + $0x18] sm:$0xf]
        %v892 = vld [vmem:[%s884 + $0x1c] sm:$0xf]
        %v893 = vld [vmem:[%s884 + $0x20] sm:$0xf]
        %v894 = vld [vmem:[%s884 + $0x24] sm:$0xf]
        %v895 = vld [vmem:[%s884 + $0x28] sm:$0xf]
        %v896 = vld [vmem:[%s884 + $0x2c] sm:$0xf]
        %v897 = vld [vmem:[%s884 + $0x30] sm:$0xf]
        %v898 = vld [vmem:[%s884 + $0x34] sm:$0xf]
        %v899 = vld [vmem:[%s884 + $0x38] sm:$0xf]
        %v900 = vld [vmem:[%s884 + $0x3c] sm:$0xf]
        %s901 = scalar_lea.vmem %s3, 2
        %v902 = vld [vmem:[%s901] sm:$0x1]
        %v904 = vlaneseq
        %v905 = vshrl.u32 %v904, 7
        %v906 = vsub.s32 0, %v905
        %v907 = vrot.slane %v902, %v906
        %v925 = vunpack.c.l.b16 %v885
        %v926 = vunpack.c.l.b16 %v886
        %v927 = vunpack.c.l.b16 %v887
        %v928 = vunpack.c.l.b16 %v888
        %v929 = vunpack.c.l.b16 %v889
        %v930 = vunpack.c.l.b16 %v890
        %v931 = vunpack.c.l.b16 %v891
        %v932 = vunpack.c.l.b16 %v892
        %v933 = vunpack.c.l.b16 %v893
        %v934 = vunpack.c.l.b16 %v894
        %v935 = vunpack.c.l.b16 %v895
        %v936 = vunpack.c.l.b16 %v896
        %v937 = vunpack.c.l.b16 %v897
        %v938 = vunpack.c.l.b16 %v898
        %v939 = vunpack.c.l.b16 %v899
        %v940 = vunpack.c.l.b16 %v900
        %v941 = vpack.c.b16 %v926, %v925
        %v942 = vpack.c.b16 %v928, %v927
        %v943 = vpack.c.b16 %v930, %v929
        %v944 = vpack.c.b16 %v932, %v931
        %v945 = vpack.c.b16 %v934, %v933
        %v946 = vpack.c.b16 %v936, %v935
        %v947 = vpack.c.b16 %v938, %v937
        %v948 = vpack.c.b16 %v940, %v939
        %957 = vmatprep.subr.bf16.mxu0 0
        %958 = vmatpush1.bf16.msra.mxu0 %v941
        %959 = vmatprep.subr.bf16.mxu0 0
        %960 = vmatpush1.bf16.msra.mxu0 %v942
        %961 = vmatprep.subr.bf16.mxu0 0
        %962 = vmatpush1.bf16.msra.mxu0 %v943
        %963 = vmatprep.subr.bf16.mxu0 0
        %964 = vmatpush1.bf16.msra.mxu0 %v944
        %965 = vmatprep.subr.bf16.mxu0 0
        %966 = vmatpush1.bf16.msra.mxu0 %v945
        %967 = vmatprep.subr.bf16.mxu0 0
        %968 = vmatpush1.bf16.msra.mxu0 %v946
        %969 = vmatprep.subr.bf16.mxu0 0
        %970 = vmatpush1.bf16.msra.mxu0 %v947
        %971 = vmatprep.subr.bf16.mxu0 0
        %972 = vmatpush1.bf16.msra.mxu0 %v948
        %973 = vmatprep.subr.bf16.mxu0 0
        %974 = vmatpush1.bf16.msra.mxu0 0
        %975 = vmatprep.subr.bf16.mxu0 0
        %976 = vmatpush1.bf16.msra.mxu0 0
        %977 = vmatprep.subr.bf16.mxu0 0
        %978 = vmatpush1.bf16.msra.mxu0 0
        %979 = vmatprep.subr.bf16.mxu0 0
        %980 = vmatpush1.bf16.msra.mxu0 0
        %981 = vmatprep.subr.bf16.mxu0 0
        %982 = vmatpush1.bf16.msra.mxu0 0
        %983 = vmatprep.subr.bf16.mxu0 0
        %984 = vmatpush1.bf16.msra.mxu0 0
        %985 = vmatprep.subr.bf16.mxu0 0
        %986 = vmatpush1.bf16.msra.mxu0 0
        %987 = vmatprep.subr.bf16.mxu0 0
        %988 = vmatpush1.bf16.msra.mxu0 0
        %989 = vmatprep.mubr.bf16.mxu0 0
        %990 = vmatmul.mubr.bf16.gmra.mrb[0].mxu0 %v868
        %v991 = vpop.f32.mrb[0].mxu0
        %v992 = vadd.f32 %v907, %v991
        %v993 = vpop.f32.mrb[0].mxu0
        %v994 = vpop.f32.mrb[0].mxu0
        %v995 = vadd.f32 %v907, %v994
        %v996 = vpop.f32.mrb[0].mxu0
        %997 = vmatprep.mubr.bf16.mxu0 0
        %998 = vmatmul.mubr.bf16.gmra.mrb[0].mxu0 %v869
        %v999 = vpop.f32.mrb[0].mxu0
        %v1000 = vadd.f32 %v907, %v999
        %v1001 = vpop.f32.mrb[0].mxu0
        %v1002 = vpop.f32.mrb[0].mxu0
        %v1003 = vadd.f32 %v907, %v1002
        %v1004 = vpop.f32.mrb[0].mxu0
        %1005 = vmatprep.mubr.bf16.mxu0 0
        %1006 = vmatmul.mubr.bf16.gmra.mrb[0].mxu0 %v870
        %v1007 = vpop.f32.mrb[0].mxu0
        %v1008 = vadd.f32 %v907, %v1007
        %v1009 = vpop.f32.mrb[0].mxu0
        %v1010 = vpop.f32.mrb[0].mxu0
        %v1011 = vadd.f32 %v907, %v1010
        %v1012 = vpop.f32.mrb[0].mxu0
        %1013 = vmatprep.mubr.bf16.mxu0 0
        %1014 = vmatmul.mubr.bf16.gmra.mrb[0].mxu0 %v871
        %v1015 = vpop.f32.mrb[0].mxu0
        %v1016 = vadd.f32 %v907, %v1015
        %v1017 = vpop.f32.mrb[0].mxu0
        %v1018 = vpop.f32.mrb[0].mxu0
        %v1019 = vadd.f32 %v907, %v1018
        %v1020 = vpop.f32.mrb[0].mxu0
        %1021 = vmatprep.mubr.bf16.mxu0 0
        %1022 = vmatmul.mubr.bf16.gmra.mrb[0].mxu0 %v872
        %v1023 = vpop.f32.mrb[0].mxu0
        %v1024 = vadd.f32 %v907, %v1023
        %v1025 = vpop.f32.mrb[0].mxu0
        %v1026 = vpop.f32.mrb[0].mxu0
        %v1027 = vadd.f32 %v907, %v1026
        %v1028 = vpop.f32.mrb[0].mxu0
        %1029 = vmatprep.mubr.bf16.mxu0 0
        %1030 = vmatmul.mubr.bf16.gmra.mrb[0].mxu0 %v873
        %v1031 = vpop.f32.mrb[0].mxu0
        %v1032 = vadd.f32 %v907, %v1031
        %v1033 = vpop.f32.mrb[0].mxu0
        %v1034 = vpop.f32.mrb[0].mxu0
        %v1035 = vadd.f32 %v907, %v1034
        %v1036 = vpop.f32.mrb[0].mxu0
        %1037 = vmatprep.mubr.bf16.mxu0 0
        %1038 = vmatmul.mubr.bf16.gmra.mrb[0].mxu0 %v874
        %v1039 = vpop.f32.mrb[0].mxu0
        %v1040 = vadd.f32 %v907, %v1039
        %v1041 = vpop.f32.mrb[0].mxu0
        %v1042 = vpop.f32.mrb[0].mxu0
        %v1043 = vadd.f32 %v907, %v1042
        %v1044 = vpop.f32.mrb[0].mxu0
        %1045 = vmatprep.mubr.bf16.mxu0 0
        %1046 = vmatmul.mubr.bf16.gmra.mrb[0].mxu0 %v875
        %v1047 = vpop.f32.mrb[0].mxu0
        %v1048 = vadd.f32 %v907, %v1047
        %v1049 = vpop.f32.mrb[0].mxu0
        %v1050 = vpop.f32.mrb[0].mxu0
        %v1051 = vadd.f32 %v907, %v1050
        %v1052 = vpop.f32.mrb[0].mxu0
        %1053 = vmatprep.mubr.bf16.mxu0 0
        %1054 = vmatmul.mubr.bf16.gmra.mrb[0].mxu0 %v876
        %v1055 = vpop.f32.mrb[0].mxu0
        %v1056 = vadd.f32 %v907, %v1055
        %v1057 = vpop.f32.mrb[0].mxu0
        %v1058 = vpop.f32.mrb[0].mxu0
        %v1059 = vadd.f32 %v907, %v1058
        %v1060 = vpop.f32.mrb[0].mxu0
        %1061 = vmatprep.mubr.bf16.mxu0 0
        %1062 = vmatmul.mubr.bf16.gmra.mrb[0].mxu0 %v877
        %v1063 = vpop.f32.mrb[0].mxu0
        %v1064 = vadd.f32 %v907, %v1063
        %v1065 = vpop.f32.mrb[0].mxu0
        %v1066 = vpop.f32.mrb[0].mxu0
        %v1067 = vadd.f32 %v907, %v1066
        %v1068 = vpop.f32.mrb[0].mxu0
        %1069 = vmatprep.mubr.bf16.mxu0 0
        %1070 = vmatmul.mubr.bf16.gmra.mrb[0].mxu0 %v878
        %v1071 = vpop.f32.mrb[0].mxu0
        %v1072 = vadd.f32 %v907, %v1071
        %v1073 = vpop.f32.mrb[0].mxu0
        %v1074 = vpop.f32.mrb[0].mxu0
        %v1075 = vadd.f32 %v907, %v1074
        %v1076 = vpop.f32.mrb[0].mxu0
        %1077 = vmatprep.mubr.bf16.mxu0 0
        %1078 = vmatmul.mubr.bf16.gmra.mrb[0].mxu0 %v879
        %v1079 = vpop.f32.mrb[0].mxu0
        %v1080 = vadd.f32 %v907, %v1079
        %v1081 = vpop.f32.mrb[0].mxu0
        %v1082 = vpop.f32.mrb[0].mxu0
        %v1083 = vadd.f32 %v907, %v1082
        %v1084 = vpop.f32.mrb[0].mxu0
        %1085 = vmatprep.mubr.bf16.mxu0 0
        %1086 = vmatmul.mubr.bf16.gmra.mrb[0].mxu0 %v880
        %v1087 = vpop.f32.mrb[0].mxu0
        %v1088 = vadd.f32 %v907, %v1087
        %v1089 = vpop.f32.mrb[0].mxu0
        %v1090 = vpop.f32.mrb[0].mxu0
        %v1091 = vadd.f32 %v907, %v1090
        %v1092 = vpop.f32.mrb[0].mxu0
        %1093 = vmatprep.mubr.bf16.mxu0 0
        %1094 = vmatmul.mubr.bf16.gmra.mrb[0].mxu0 %v881
        %v1095 = vpop.f32.mrb[0].mxu0
        %v1096 = vadd.f32 %v907, %v1095
        %v1097 = vpop.f32.mrb[0].mxu0
        %v1098 = vpop.f32.mrb[0].mxu0
        %v1099 = vadd.f32 %v907, %v1098
        %v1100 = vpop.f32.mrb[0].mxu0
        %1101 = vmatprep.mubr.bf16.mxu0 0
        %1102 = vmatmul.mubr.bf16.gmra.mrb[0].mxu0 %v882
        %v1103 = vpop.f32.mrb[0].mxu0
        %v1104 = vadd.f32 %v907, %v1103
        %v1105 = vpop.f32.mrb[0].mxu0
        %v1106 = vpop.f32.mrb[0].mxu0
        %v1107 = vadd.f32 %v907, %v1106
        %v1108 = vpop.f32.mrb[0].mxu0
        %1109 = vmatprep.mubr.bf16.mxu0 0
        %1110 = vmatmul.mubr.bf16.gmra.mrb[0].mxu0 %v883
        %v1111 = vpop.f32.mrb[0].mxu0
        %v1112 = vadd.f32 %v907, %v1111
        %v1113 = vpop.f32.mrb[0].mxu0
        %v1114 = vpop.f32.mrb[0].mxu0
        %v1115 = vadd.f32 %v907, %v1114
        %v1116 = vpop.f32.mrb[0].mxu0
        %1117 = vdwg.mxu0
        %v1118 = vmax.f32 %v992, 0.0
        %v1119 = vmax.f32 %v995, 0.0
        %v1120 = vmax.f32 %v1000, 0.0
        %v1121 = vmax.f32 %v1003, 0.0
        %v1122 = vmax.f32 %v1008, 0.0
        %v1123 = vmax.f32 %v1011, 0.0
        %v1124 = vmax.f32 %v1016, 0.0
        %v1125 = vmax.f32 %v1019, 0.0
        %v1126 = vmax.f32 %v1024, 0.0
        %v1127 = vmax.f32 %v1027, 0.0
        %v1128 = vmax.f32 %v1032, 0.0
        %v1129 = vmax.f32 %v1035, 0.0
        %v1130 = vmax.f32 %v1040, 0.0
        %v1131 = vmax.f32 %v1043, 0.0
        %v1132 = vmax.f32 %v1048, 0.0
        %v1133 = vmax.f32 %v1051, 0.0
        %v1134 = vmax.f32 %v1056, 0.0
        %v1135 = vmax.f32 %v1059, 0.0
        %v1136 = vmax.f32 %v1064, 0.0
        %v1137 = vmax.f32 %v1067, 0.0
        %v1138 = vmax.f32 %v1072, 0.0
        %v1139 = vmax.f32 %v1075, 0.0
        %v1140 = vmax.f32 %v1080, 0.0
        %v1141 = vmax.f32 %v1083, 0.0
        %v1142 = vmax.f32 %v1088, 0.0
        %v1143 = vmax.f32 %v1091, 0.0
        %v1144 = vmax.f32 %v1096, 0.0
        %v1145 = vmax.f32 %v1099, 0.0
        %v1146 = vmax.f32 %v1104, 0.0
        %v1147 = vmax.f32 %v1107, 0.0
        %v1148 = vmax.f32 %v1112, 0.0
        %v1149 = vmax.f32 %v1115, 0.0
        %v1150 = vpack.c.bf16 %v1119, %v1118
        %v1151 = vpack.c.bf16 %v1121, %v1120
        %v1152 = vpack.c.bf16 %v1123, %v1122
        %v1153 = vpack.c.bf16 %v1125, %v1124
        %v1154 = vpack.c.bf16 %v1127, %v1126
        %v1155 = vpack.c.bf16 %v1129, %v1128
        %v1156 = vpack.c.bf16 %v1131, %v1130
        %v1157 = vpack.c.bf16 %v1133, %v1132
        %v1158 = vpack.c.bf16 %v1135, %v1134
        %v1159 = vpack.c.bf16 %v1137, %v1136
        %v1160 = vpack.c.bf16 %v1139, %v1138
        %v1161 = vpack.c.bf16 %v1141, %v1140
        %v1162 = vpack.c.bf16 %v1143, %v1142
        %v1163 = vpack.c.bf16 %v1145, %v1144
        %v1164 = vpack.c.bf16 %v1147, %v1146
        %v1165 = vpack.c.bf16 %v1149, %v1148
        %s1166 = scalar_lea.vmem [#allocation7], 192
        %v1167 = vld [vmem:[%s1166] sm:$0xf]
        %v1168 = vld [vmem:[%s1166 + $0x4] sm:$0xf]
        %v1169 = vld [vmem:[%s1166 + $0x8] sm:$0xf]
        %v1170 = vld [vmem:[%s1166 + $0xc] sm:$0xf]
        %v1171 = vld [vmem:[%s1166 + $0x10] sm:$0xf]
        %v1172 = vld [vmem:[%s1166 + $0x14] sm:$0xf]
        %v1173 = vld [vmem:[%s1166 + $0x18] sm:$0xf]
        %v1174 = vld [vmem:[%s1166 + $0x1c] sm:$0xf]
        %v1175 = vld [vmem:[%s1166 + $0x20] sm:$0xf]
        %v1176 = vld [vmem:[%s1166 + $0x24] sm:$0xf]
        %v1177 = vld [vmem:[%s1166 + $0x28] sm:$0xf]
        %v1178 = vld [vmem:[%s1166 + $0x2c] sm:$0xf]
        %v1179 = vld [vmem:[%s1166 + $0x30] sm:$0xf]
        %v1180 = vld [vmem:[%s1166 + $0x34] sm:$0xf]
        %v1181 = vld [vmem:[%s1166 + $0x38] sm:$0xf]
        %v1182 = vld [vmem:[%s1166 + $0x3c] sm:$0xf]
        %s1183 = scalar_lea.vmem %s3, 3
        %v1184 = vld [vmem:[%s1183] sm:$0x1]
        %v1186 = vlaneseq
        %v1187 = vshrl.u32 %v1186, 7
        %v1188 = vsub.s32 0, %v1187
        %v1189 = vrot.slane %v1184, %v1188
        %v1207 = vunpack.c.l.b16 %v1167
        %v1208 = vunpack.c.l.b16 %v1168
        %v1209 = vunpack.c.l.b16 %v1169
        %v1210 = vunpack.c.l.b16 %v1170
        %v1211 = vunpack.c.l.b16 %v1171
        %v1212 = vunpack.c.l.b16 %v1172
        %v1213 = vunpack.c.l.b16 %v1173
        %v1214 = vunpack.c.l.b16 %v1174
        %v1215 = vunpack.c.l.b16 %v1175
        %v1216 = vunpack.c.l.b16 %v1176
        %v1217 = vunpack.c.l.b16 %v1177
        %v1218 = vunpack.c.l.b16 %v1178
        %v1219 = vunpack.c.l.b16 %v1179
        %v1220 = vunpack.c.l.b16 %v1180
        %v1221 = vunpack.c.l.b16 %v1181
        %v1222 = vunpack.c.l.b16 %v1182
        %v1223 = vpack.c.b16 %v1208, %v1207
        %v1224 = vpack.c.b16 %v1210, %v1209
        %v1225 = vpack.c.b16 %v1212, %v1211
        %v1226 = vpack.c.b16 %v1214, %v1213
        %v1227 = vpack.c.b16 %v1216, %v1215
        %v1228 = vpack.c.b16 %v1218, %v1217
        %v1229 = vpack.c.b16 %v1220, %v1219
        %v1230 = vpack.c.b16 %v1222, %v1221
        %1239 = vmatprep.subr.bf16.mxu0 0
        %1240 = vmatpush1.bf16.msra.mxu0 %v1223
        %1241 = vmatprep.subr.bf16.mxu0 0
        %1242 = vmatpush1.bf16.msra.mxu0 %v1224
        %1243 = vmatprep.subr.bf16.mxu0 0
        %1244 = vmatpush1.bf16.msra.mxu0 %v1225
        %1245 = vmatprep.subr.bf16.mxu0 0
        %1246 = vmatpush1.bf16.msra.mxu0 %v1226
        %1247 = vmatprep.subr.bf16.mxu0 0
        %1248 = vmatpush1.bf16.msra.mxu0 %v1227
        %1249 = vmatprep.subr.bf16.mxu0 0
        %1250 = vmatpush1.bf16.msra.mxu0 %v1228
        %1251 = vmatprep.subr.bf16.mxu0 0
        %1252 = vmatpush1.bf16.msra.mxu0 %v1229
        %1253 = vmatprep.subr.bf16.mxu0 0
        %1254 = vmatpush1.bf16.msra.mxu0 %v1230
        %1255 = vmatprep.subr.bf16.mxu0 0
        %1256 = vmatpush1.bf16.msra.mxu0 0
        %1257 = vmatprep.subr.bf16.mxu0 0
        %1258 = vmatpush1.bf16.msra.mxu0 0
        %1259 = vmatprep.subr.bf16.mxu0 0
        %1260 = vmatpush1.bf16.msra.mxu0 0
        %1261 = vmatprep.subr.bf16.mxu0 0
        %1262 = vmatpush1.bf16.msra.mxu0 0
        %1263 = vmatprep.subr.bf16.mxu0 0
        %1264 = vmatpush1.bf16.msra.mxu0 0
        %1265 = vmatprep.subr.bf16.mxu0 0
        %1266 = vmatpush1.bf16.msra.mxu0 0
        %1267 = vmatprep.subr.bf16.mxu0 0
        %1268 = vmatpush1.bf16.msra.mxu0 0
        %1269 = vmatprep.subr.bf16.mxu0 0
        %1270 = vmatpush1.bf16.msra.mxu0 0
        %1271 = vmatprep.mubr.bf16.mxu0 0
        %1272 = vmatmul.mubr.bf16.gmra.mrb[0].mxu0 %v1150
        %v1273 = vpop.f32.mrb[0].mxu0
        %v1274 = vadd.f32 %v1189, %v1273
        %v1275 = vpop.f32.mrb[0].mxu0
        %v1276 = vpop.f32.mrb[0].mxu0
        %v1277 = vadd.f32 %v1189, %v1276
        %v1278 = vpop.f32.mrb[0].mxu0
        %1279 = vmatprep.mubr.bf16.mxu0 0
        %1280 = vmatmul.mubr.bf16.gmra.mrb[0].mxu0 %v1151
        %v1281 = vpop.f32.mrb[0].mxu0
        %v1282 = vadd.f32 %v1189, %v1281
        %v1283 = vpop.f32.mrb[0].mxu0
        %v1284 = vpop.f32.mrb[0].mxu0
        %v1285 = vadd.f32 %v1189, %v1284
        %v1286 = vpop.f32.mrb[0].mxu0
        %1287 = vmatprep.mubr.bf16.mxu0 0
        %1288 = vmatmul.mubr.bf16.gmra.mrb[0].mxu0 %v1152
        %v1289 = vpop.f32.mrb[0].mxu0
        %v1290 = vadd.f32 %v1189, %v1289
        %v1291 = vpop.f32.mrb[0].mxu0
        %v1292 = vpop.f32.mrb[0].mxu0
        %v1293 = vadd.f32 %v1189, %v1292
        %v1294 = vpop.f32.mrb[0].mxu0
        %1295 = vmatprep.mubr.bf16.mxu0 0
        %1296 = vmatmul.mubr.bf16.gmra.mrb[0].mxu0 %v1153
        %v1297 = vpop.f32.mrb[0].mxu0
        %v1298 = vadd.f32 %v1189, %v1297
        %v1299 = vpop.f32.mrb[0].mxu0
        %v1300 = vpop.f32.mrb[0].mxu0
        %v1301 = vadd.f32 %v1189, %v1300
        %v1302 = vpop.f32.mrb[0].mxu0
        %1303 = vmatprep.mubr.bf16.mxu0 0
        %1304 = vmatmul.mubr.bf16.gmra.mrb[0].mxu0 %v1154
        %v1305 = vpop.f32.mrb[0].mxu0
        %v1306 = vadd.f32 %v1189, %v1305
        %v1307 = vpop.f32.mrb[0].mxu0
        %v1308 = vpop.f32.mrb[0].mxu0
        %v1309 = vadd.f32 %v1189, %v1308
        %v1310 = vpop.f32.mrb[0].mxu0
        %1311 = vmatprep.mubr.bf16.mxu0 0
        %1312 = vmatmul.mubr.bf16.gmra.mrb[0].mxu0 %v1155
        %v1313 = vpop.f32.mrb[0].mxu0
        %v1314 = vadd.f32 %v1189, %v1313
        %v1315 = vpop.f32.mrb[0].mxu0
        %v1316 = vpop.f32.mrb[0].mxu0
        %v1317 = vadd.f32 %v1189, %v1316
        %v1318 = vpop.f32.mrb[0].mxu0
        %1319 = vmatprep.mubr.bf16.mxu0 0
        %1320 = vmatmul.mubr.bf16.gmra.mrb[0].mxu0 %v1156
        %v1321 = vpop.f32.mrb[0].mxu0
        %v1322 = vadd.f32 %v1189, %v1321
        %v1323 = vpop.f32.mrb[0].mxu0
        %v1324 = vpop.f32.mrb[0].mxu0
        %v1325 = vadd.f32 %v1189, %v1324
        %v1326 = vpop.f32.mrb[0].mxu0
        %1327 = vmatprep.mubr.bf16.mxu0 0
        %1328 = vmatmul.mubr.bf16.gmra.mrb[0].mxu0 %v1157
        %v1329 = vpop.f32.mrb[0].mxu0
        %v1330 = vadd.f32 %v1189, %v1329
        %v1331 = vpop.f32.mrb[0].mxu0
        %v1332 = vpop.f32.mrb[0].mxu0
        %v1333 = vadd.f32 %v1189, %v1332
        %v1334 = vpop.f32.mrb[0].mxu0
        %1335 = vmatprep.mubr.bf16.mxu0 0
        %1336 = vmatmul.mubr.bf16.gmra.mrb[0].mxu0 %v1158
        %v1337 = vpop.f32.mrb[0].mxu0
        %v1338 = vadd.f32 %v1189, %v1337
        %v1339 = vpop.f32.mrb[0].mxu0
        %v1340 = vpop.f32.mrb[0].mxu0
        %v1341 = vadd.f32 %v1189, %v1340
        %v1342 = vpop.f32.mrb[0].mxu0
        %1343 = vmatprep.mubr.bf16.mxu0 0
        %1344 = vmatmul.mubr.bf16.gmra.mrb[0].mxu0 %v1159
        %v1345 = vpop.f32.mrb[0].mxu0
        %v1346 = vadd.f32 %v1189, %v1345
        %v1347 = vpop.f32.mrb[0].mxu0
        %v1348 = vpop.f32.mrb[0].mxu0
        %v1349 = vadd.f32 %v1189, %v1348
        %v1350 = vpop.f32.mrb[0].mxu0
        %1351 = vmatprep.mubr.bf16.mxu0 0
        %1352 = vmatmul.mubr.bf16.gmra.mrb[0].mxu0 %v1160
        %v1353 = vpop.f32.mrb[0].mxu0
        %v1354 = vadd.f32 %v1189, %v1353
        %v1355 = vpop.f32.mrb[0].mxu0
        %v1356 = vpop.f32.mrb[0].mxu0
        %v1357 = vadd.f32 %v1189, %v1356
        %v1358 = vpop.f32.mrb[0].mxu0
        %1359 = vmatprep.mubr.bf16.mxu0 0
        %1360 = vmatmul.mubr.bf16.gmra.mrb[0].mxu0 %v1161
        %v1361 = vpop.f32.mrb[0].mxu0
        %v1362 = vadd.f32 %v1189, %v1361
        %v1363 = vpop.f32.mrb[0].mxu0
        %v1364 = vpop.f32.mrb[0].mxu0
        %v1365 = vadd.f32 %v1189, %v1364
        %v1366 = vpop.f32.mrb[0].mxu0
        %1367 = vmatprep.mubr.bf16.mxu0 0
        %1368 = vmatmul.mubr.bf16.gmra.mrb[0].mxu0 %v1162
        %v1369 = vpop.f32.mrb[0].mxu0
        %v1370 = vadd.f32 %v1189, %v1369
        %v1371 = vpop.f32.mrb[0].mxu0
        %v1372 = vpop.f32.mrb[0].mxu0
        %v1373 = vadd.f32 %v1189, %v1372
        %v1374 = vpop.f32.mrb[0].mxu0
        %1375 = vmatprep.mubr.bf16.mxu0 0
        %1376 = vmatmul.mubr.bf16.gmra.mrb[0].mxu0 %v1163
        %v1377 = vpop.f32.mrb[0].mxu0
        %v1378 = vadd.f32 %v1189, %v1377
        %v1379 = vpop.f32.mrb[0].mxu0
        %v1380 = vpop.f32.mrb[0].mxu0
        %v1381 = vadd.f32 %v1189, %v1380
        %v1382 = vpop.f32.mrb[0].mxu0
        %1383 = vmatprep.mubr.bf16.mxu0 0
        %1384 = vmatmul.mubr.bf16.gmra.mrb[0].mxu0 %v1164
        %v1385 = vpop.f32.mrb[0].mxu0
        %v1386 = vadd.f32 %v1189, %v1385
        %v1387 = vpop.f32.mrb[0].mxu0
        %v1388 = vpop.f32.mrb[0].mxu0
        %v1389 = vadd.f32 %v1189, %v1388
        %v1390 = vpop.f32.mrb[0].mxu0
        %1391 = vmatprep.mubr.bf16.mxu0 0
        %1392 = vmatmul.mubr.bf16.gmra.mrb[0].mxu0 %v1165
        %v1393 = vpop.f32.mrb[0].mxu0
        %v1394 = vadd.f32 %v1189, %v1393
        %v1395 = vpop.f32.mrb[0].mxu0
        %v1396 = vpop.f32.mrb[0].mxu0
        %v1397 = vadd.f32 %v1189, %v1396
        %v1398 = vpop.f32.mrb[0].mxu0
        %1399 = vdwg.mxu0
        %v1400 = vlaneseq
        %v1401 = vand.u32 %v1400, 127
        %vm1402 = vcmp.lt.s32.totalorder %v1401, 29
        %v1403 = vsel %vm1402, %v1274, 0.0
        %v1404 = vsel %vm1402, %v1277, 0.0
        %v1405 = vsel %vm1402, %v1282, 0.0
        %v1406 = vsel %vm1402, %v1285, 0.0
        %v1407 = vsel %vm1402, %v1290, 0.0
        %v1408 = vsel %vm1402, %v1293, 0.0
        %v1409 = vsel %vm1402, %v1298, 0.0
        %v1410 = vsel %vm1402, %v1301, 0.0
        %v1411 = vsel %vm1402, %v1306, 0.0
        %v1412 = vsel %vm1402, %v1309, 0.0
        %v1413 = vsel %vm1402, %v1314, 0.0
        %v1414 = vsel %vm1402, %v1317, 0.0
        %v1415 = vsel %vm1402, %v1322, 0.0
        %v1416 = vsel %vm1402, %v1325, 0.0
        %v1417 = vsel %vm1402, %v1330, 0.0
        %v1418 = vsel %vm1402, %v1333, 0.0
        %v1419 = vsel %vm1402, %v1338, 0.0
        %v1420 = vsel %vm1402, %v1341, 0.0
        %v1421 = vsel %vm1402, %v1346, 0.0
        %v1422 = vsel %vm1402, %v1349, 0.0
        %v1423 = vsel %vm1402, %v1354, 0.0
        %v1424 = vsel %vm1402, %v1357, 0.0
        %v1425 = vsel %vm1402, %v1362, 0.0
        %v1426 = vsel %vm1402, %v1365, 0.0
        %v1427 = vsel %vm1402, %v1370, 0.0
        %v1428 = vsel %vm1402, %v1373, 0.0
        %v1429 = vsel %vm1402, %v1378, 0.0
        %v1430 = vsel %vm1402, %v1381, 0.0
        %v1431 = vsel %vm1402, %v1386, 0.0
        %v1432 = vsel %vm1402, %v1389, 0.0
        %v1433 = vsel %vm1402, %v1394, 0.0
        %v1434 = vsel %vm1402, %v1397, 0.0
        %vm1435 = vcmp.ge.s32.totalorder %v1401, 29
        %vm1436 = vcmp.lt.s32.totalorder %v1401, 58
        %vm1437 = vmand %vm1435, %vm1436
        %v1438 = vsel %vm1437, %v1274, 0.0
        %v1439 = vsel %vm1437, %v1277, 0.0
        %v1440 = vsel %vm1437, %v1282, 0.0
        %v1441 = vsel %vm1437, %v1285, 0.0
        %v1442 = vsel %vm1437, %v1290, 0.0
        %v1443 = vsel %vm1437, %v1293, 0.0
        %v1444 = vsel %vm1437, %v1298, 0.0
        %v1445 = vsel %vm1437, %v1301, 0.0
        %v1446 = vsel %vm1437, %v1306, 0.0
        %v1447 = vsel %vm1437, %v1309, 0.0
        %v1448 = vsel %vm1437, %v1314, 0.0
        %v1449 = vsel %vm1437, %v1317, 0.0
        %v1450 = vsel %vm1437, %v1322, 0.0
        %v1451 = vsel %vm1437, %v1325, 0.0
        %v1452 = vsel %vm1437, %v1330, 0.0
        %v1453 = vsel %vm1437, %v1333, 0.0
        %v1454 = vsel %vm1437, %v1338, 0.0
        %v1455 = vsel %vm1437, %v1341, 0.0
        %v1456 = vsel %vm1437, %v1346, 0.0
        %v1457 = vsel %vm1437, %v1349, 0.0
        %v1458 = vsel %vm1437, %v1354, 0.0
        %v1459 = vsel %vm1437, %v1357, 0.0
        %v1460 = vsel %vm1437, %v1362, 0.0
        %v1461 = vsel %vm1437, %v1365, 0.0
        %v1462 = vsel %vm1437, %v1370, 0.0
        %v1463 = vsel %vm1437, %v1373, 0.0
        %v1464 = vsel %vm1437, %v1378, 0.0
        %v1465 = vsel %vm1437, %v1381, 0.0
        %v1466 = vsel %vm1437, %v1386, 0.0
        %v1467 = vsel %vm1437, %v1389, 0.0
        %v1468 = vsel %vm1437, %v1394, 0.0
        %v1469 = vsel %vm1437, %v1397, 0.0
        %v1470 = vmul.f32 %v1438, 1.442695
        %v1471 = vpow.pop %v1470
        %v1472 = vmul.f32 %v1439, 1.442695
        %v1473 = vpow.pop %v1472
        %v1474 = vmul.f32 %v1440, 1.442695
        %v1475 = vpow.pop %v1474
        %v1476 = vmul.f32 %v1441, 1.442695
        %v1477 = vpow.pop %v1476
        %v1478 = vmul.f32 %v1442, 1.442695
        %v1479 = vpow.pop %v1478
        %v1480 = vmul.f32 %v1443, 1.442695
        %v1481 = vpow.pop %v1480
        %v1482 = vmul.f32 %v1444, 1.442695
        %v1483 = vpow.pop %v1482
        %v1484 = vmul.f32 %v1445, 1.442695
        %v1485 = vpow.pop %v1484
        %v1486 = vmul.f32 %v1446, 1.442695
        %v1487 = vpow.pop %v1486
        %v1488 = vmul.f32 %v1447, 1.442695
        %v1489 = vpow.pop %v1488
        %v1490 = vmul.f32 %v1448, 1.442695
        %v1491 = vpow.pop %v1490
        %v1492 = vmul.f32 %v1449, 1.442695
        %v1493 = vpow.pop %v1492
        %v1494 = vmul.f32 %v1450, 1.442695
        %v1495 = vpow.pop %v1494
        %v1496 = vmul.f32 %v1451, 1.442695
        %v1497 = vpow.pop %v1496
        %v1498 = vmul.f32 %v1452, 1.442695
        %v1499 = vpow.pop %v1498
        %v1500 = vmul.f32 %v1453, 1.442695
        %v1501 = vpow.pop %v1500
        %v1502 = vmul.f32 %v1454, 1.442695
        %v1503 = vpow.pop %v1502
        %v1504 = vmul.f32 %v1455, 1.442695
        %v1505 = vpow.pop %v1504
        %v1506 = vmul.f32 %v1456, 1.442695
        %v1507 = vpow.pop %v1506
        %v1508 = vmul.f32 %v1457, 1.442695
        %v1509 = vpow.pop %v1508
        %v1510 = vmul.f32 %v1458, 1.442695
        %v1511 = vpow.pop %v1510
        %v1512 = vmul.f32 %v1459, 1.442695
        %v1513 = vpow.pop %v1512
        %v1514 = vmul.f32 %v1460, 1.442695
        %v1515 = vpow.pop %v1514
        %v1516 = vmul.f32 %v1461, 1.442695
        %v1517 = vpow.pop %v1516
        %v1518 = vmul.f32 %v1462, 1.442695
        %v1519 = vpow.pop %v1518
        %v1520 = vmul.f32 %v1463, 1.442695
        %v1521 = vpow.pop %v1520
        %v1522 = vmul.f32 %v1464, 1.442695
        %v1523 = vpow.pop %v1522
        %v1524 = vmul.f32 %v1465, 1.442695
        %v1525 = vpow.pop %v1524
        %v1526 = vmul.f32 %v1466, 1.442695
        %v1527 = vpow.pop %v1526
        %v1528 = vmul.f32 %v1467, 1.442695
        %v1529 = vpow.pop %v1528
        %v1530 = vmul.f32 %v1468, 1.442695
        %v1531 = vpow.pop %v1530
        %v1532 = vmul.f32 %v1469, 1.442695
        %v1533 = vpow.pop %v1532
        %v1534 = vld [vmem:[%s236] sm:$0xff]
        %v1535 = vld [vmem:[%s236 + $0x8] sm:$0xff]
        %v1536 = vld [vmem:[%s236 + $0x10] sm:$0xff]
        %v1537 = vld [vmem:[%s236 + $0x18] sm:$0xff]
        %v1538 = vld [vmem:[%s236 + $0x20] sm:$0xff]
        %v1539 = vld [vmem:[%s236 + $0x28] sm:$0xff]
        %v1540 = vld [vmem:[%s236 + $0x30] sm:$0xff]
        %v1541 = vld [vmem:[%s236 + $0x38] sm:$0xff]
        %v1542 = vld [vmem:[%s236 + $0x40] sm:$0xff]
        %v1543 = vld [vmem:[%s236 + $0x48] sm:$0xff]
        %v1544 = vld [vmem:[%s236 + $0x50] sm:$0xff]
        %v1545 = vld [vmem:[%s236 + $0x58] sm:$0xff]
        %v1546 = vld [vmem:[%s236 + $0x60] sm:$0xff]
        %v1547 = vld [vmem:[%s236 + $0x68] sm:$0xff]
        %v1548 = vld [vmem:[%s236 + $0x70] sm:$0xff]
        %v1549 = vld [vmem:[%s236 + $0x78] sm:$0xff]
        %v1550 = vld [vmem:[%s236 + $0x80] sm:$0xff]
        %v1551 = vld [vmem:[%s236 + $0x88] sm:$0xff]
        %v1552 = vld [vmem:[%s236 + $0x90] sm:$0xff]
        %v1553 = vld [vmem:[%s236 + $0x98] sm:$0xff]
        %v1554 = vld [vmem:[%s236 + $0xa0] sm:$0xff]
        %v1555 = vld [vmem:[%s236 + $0xa8] sm:$0xff]
        %v1556 = vld [vmem:[%s236 + $0xb0] sm:$0xff]
        %v1557 = vld [vmem:[%s236 + $0xb8] sm:$0xff]
        %v1558 = vld [vmem:[%s236 + $0xc0] sm:$0xff]
        %v1559 = vld [vmem:[%s236 + $0xc8] sm:$0xff]
        %v1560 = vld [vmem:[%s236 + $0xd0] sm:$0xff]
        %v1561 = vld [vmem:[%s236 + $0xd8] sm:$0xff]
        %v1562 = vld [vmem:[%s236 + $0xe0] sm:$0xff]
        %v1563 = vld [vmem:[%s236 + $0xe8] sm:$0xff]
        %v1564 = vld [vmem:[%s236 + $0xf0] sm:$0xff]
        %v1565 = vld [vmem:[%s236 + $0xf8] sm:$0xff]
        %v1566 = vmul.f32 %v1471, %v1534
        %v1567 = vmul.f32 %v1473, %v1535
        %v1568 = vmul.f32 %v1475, %v1536
        %v1569 = vmul.f32 %v1477, %v1537
        %v1570 = vmul.f32 %v1479, %v1538
        %v1571 = vmul.f32 %v1481, %v1539
        %v1572 = vmul.f32 %v1483, %v1540
        %v1573 = vmul.f32 %v1485, %v1541
        %v1574 = vmul.f32 %v1487, %v1542
        %v1575 = vmul.f32 %v1489, %v1543
        %v1576 = vmul.f32 %v1491, %v1544
        %v1577 = vmul.f32 %v1493, %v1545
        %v1578 = vmul.f32 %v1495, %v1546
        %v1579 = vmul.f32 %v1497, %v1547
        %v1580 = vmul.f32 %v1499, %v1548
        %v1581 = vmul.f32 %v1501, %v1549
        %v1582 = vmul.f32 %v1503, %v1550
        %v1583 = vmul.f32 %v1505, %v1551
        %v1584 = vmul.f32 %v1507, %v1552
        %v1585 = vmul.f32 %v1509, %v1553
        %v1586 = vmul.f32 %v1511, %v1554
        %v1587 = vmul.f32 %v1513, %v1555
        %v1588 = vmul.f32 %v1515, %v1556
        %v1589 = vmul.f32 %v1517, %v1557
        %v1590 = vmul.f32 %v1519, %v1558
        %v1591 = vmul.f32 %v1521, %v1559
        %v1592 = vmul.f32 %v1523, %v1560
        %v1593 = vmul.f32 %v1525, %v1561
        %v1594 = vmul.f32 %v1527, %v1562
        %v1595 = vmul.f32 %v1529, %v1563
        %v1596 = vmul.f32 %v1531, %v1564
        %v1597 = vmul.f32 %v1533, %v1565
        %v1598 = vadd.f32 %v1403, %v1566
        %v1599 = vadd.f32 %v1404, %v1567
        %v1600 = vadd.f32 %v1405, %v1568
        %v1601 = vadd.f32 %v1406, %v1569
        %v1602 = vadd.f32 %v1407, %v1570
        %v1603 = vadd.f32 %v1408, %v1571
        %v1604 = vadd.f32 %v1409, %v1572
        %v1605 = vadd.f32 %v1410, %v1573
        %v1606 = vadd.f32 %v1411, %v1574
        %v1607 = vadd.f32 %v1412, %v1575
        %v1608 = vadd.f32 %v1413, %v1576
        %v1609 = vadd.f32 %v1414, %v1577
        %v1610 = vadd.f32 %v1415, %v1578
        %v1611 = vadd.f32 %v1416, %v1579
        %v1612 = vadd.f32 %v1417, %v1580
        %v1613 = vadd.f32 %v1418, %v1581
        %v1614 = vadd.f32 %v1419, %v1582
        %v1615 = vadd.f32 %v1420, %v1583
        %v1616 = vadd.f32 %v1421, %v1584
        %v1617 = vadd.f32 %v1422, %v1585
        %v1618 = vadd.f32 %v1423, %v1586
        %v1619 = vadd.f32 %v1424, %v1587
        %v1620 = vadd.f32 %v1425, %v1588
        %v1621 = vadd.f32 %v1426, %v1589
        %v1622 = vadd.f32 %v1427, %v1590
        %v1623 = vadd.f32 %v1428, %v1591
        %v1624 = vadd.f32 %v1429, %v1592
        %v1625 = vadd.f32 %v1430, %v1593
        %v1626 = vadd.f32 %v1431, %v1594
        %v1627 = vadd.f32 %v1432, %v1595
        %v1628 = vadd.f32 %v1433, %v1596
        %v1629 = vadd.f32 %v1434, %v1597
        %v1630 = vpack.c.bf16 %v1599, %v1598
        %v1631 = vpack.c.bf16 %v1601, %v1600
        %v1632 = vpack.c.bf16 %v1603, %v1602
        %v1633 = vpack.c.bf16 %v1605, %v1604
        %v1634 = vpack.c.bf16 %v1607, %v1606
        %v1635 = vpack.c.bf16 %v1609, %v1608
        %v1636 = vpack.c.bf16 %v1611, %v1610
        %v1637 = vpack.c.bf16 %v1613, %v1612
        %v1638 = vpack.c.bf16 %v1615, %v1614
        %v1639 = vpack.c.bf16 %v1617, %v1616
        %v1640 = vpack.c.bf16 %v1619, %v1618
        %v1641 = vpack.c.bf16 %v1621, %v1620
        %v1642 = vpack.c.bf16 %v1623, %v1622
        %v1643 = vpack.c.bf16 %v1625, %v1624
        %v1644 = vpack.c.bf16 %v1627, %v1626
        %v1645 = vpack.c.bf16 %v1629, %v1628
        %s1646 = scalar_lea.vmem [#allocation7], 256
        %v1647 = vld [vmem:[%s1646] sm:$0xf]
        %v1648 = vld [vmem:[%s1646 + $0x4] sm:$0xf]
        %v1649 = vld [vmem:[%s1646 + $0x8] sm:$0xf]
        %v1650 = vld [vmem:[%s1646 + $0xc] sm:$0xf]
        %v1651 = vld [vmem:[%s1646 + $0x10] sm:$0xf]
        %v1652 = vld [vmem:[%s1646 + $0x14] sm:$0xf]
        %v1653 = vld [vmem:[%s1646 + $0x18] sm:$0xf]
        %v1654 = vld [vmem:[%s1646 + $0x1c] sm:$0xf]
        %v1655 = vld [vmem:[%s1646 + $0x20] sm:$0xf]
        %v1656 = vld [vmem:[%s1646 + $0x24] sm:$0xf]
        %v1657 = vld [vmem:[%s1646 + $0x28] sm:$0xf]
        %v1658 = vld [vmem:[%s1646 + $0x2c] sm:$0xf]
        %v1659 = vld [vmem:[%s1646 + $0x30] sm:$0xf]
        %v1660 = vld [vmem:[%s1646 + $0x34] sm:$0xf]
        %v1661 = vld [vmem:[%s1646 + $0x38] sm:$0xf]
        %v1662 = vld [vmem:[%s1646 + $0x3c] sm:$0xf]
        %s1663 = scalar_lea.vmem %s3, 4
        %v1664 = vld [vmem:[%s1663] sm:$0x1]
        %v1666 = vlaneseq
        %v1667 = vshrl.u32 %v1666, 7
        %v1668 = vsub.s32 0, %v1667
        %v1669 = vrot.slane %v1664, %v1668
        %v1687 = vunpack.c.l.b16 %v1647
        %v1688 = vunpack.c.l.b16 %v1648
        %v1689 = vunpack.c.l.b16 %v1649
        %v1690 = vunpack.c.l.b16 %v1650
        %v1691 = vunpack.c.l.b16 %v1651
        %v1692 = vunpack.c.l.b16 %v1652
        %v1693 = vunpack.c.l.b16 %v1653
        %v1694 = vunpack.c.l.b16 %v1654
        %v1695 = vunpack.c.l.b16 %v1655
        %v1696 = vunpack.c.l.b16 %v1656
        %v1697 = vunpack.c.l.b16 %v1657
        %v1698 = vunpack.c.l.b16 %v1658
        %v1699 = vunpack.c.l.b16 %v1659
        %v1700 = vunpack.c.l.b16 %v1660
        %v1701 = vunpack.c.l.b16 %v1661
        %v1702 = vunpack.c.l.b16 %v1662
        %v1703 = vpack.c.b16 %v1688, %v1687
        %v1704 = vpack.c.b16 %v1690, %v1689
        %v1705 = vpack.c.b16 %v1692, %v1691
        %v1706 = vpack.c.b16 %v1694, %v1693
        %v1707 = vpack.c.b16 %v1696, %v1695
        %v1708 = vpack.c.b16 %v1698, %v1697
        %v1709 = vpack.c.b16 %v1700, %v1699
        %v1710 = vpack.c.b16 %v1702, %v1701
        %1719 = vmatprep.subr.bf16.mxu0 0
        %1720 = vmatpush1.bf16.msra.mxu0 %v1703
        %1721 = vmatprep.subr.bf16.mxu0 0
        %1722 = vmatpush1.bf16.msra.mxu0 %v1704
        %1723 = vmatprep.subr.bf16.mxu0 0
        %1724 = vmatpush1.bf16.msra.mxu0 %v1705
        %1725 = vmatprep.subr.bf16.mxu0 0
        %1726 = vmatpush1.bf16.msra.mxu0 %v1706
        %1727 = vmatprep.subr.bf16.mxu0 0
        %1728 = vmatpush1.bf16.msra.mxu0 %v1707
        %1729 = vmatprep.subr.bf16.mxu0 0
        %1730 = vmatpush1.bf16.msra.mxu0 %v1708
        %1731 = vmatprep.subr.bf16.mxu0 0
        %1732 = vmatpush1.bf16.msra.mxu0 %v1709
        %1733 = vmatprep.subr.bf16.mxu0 0
        %1734 = vmatpush1.bf16.msra.mxu0 %v1710
        %1735 = vmatprep.subr.bf16.mxu0 0
        %1736 = vmatpush1.bf16.msra.mxu0 0
        %1737 = vmatprep.subr.bf16.mxu0 0
        %1738 = vmatpush1.bf16.msra.mxu0 0
        %1739 = vmatprep.subr.bf16.mxu0 0
        %1740 = vmatpush1.bf16.msra.mxu0 0
        %1741 = vmatprep.subr.bf16.mxu0 0
        %1742 = vmatpush1.bf16.msra.mxu0 0
        %1743 = vmatprep.subr.bf16.mxu0 0
        %1744 = vmatpush1.bf16.msra.mxu0 0
        %1745 = vmatprep.subr.bf16.mxu0 0
        %1746 = vmatpush1.bf16.msra.mxu0 0
        %1747 = vmatprep.subr.bf16.mxu0 0
        %1748 = vmatpush1.bf16.msra.mxu0 0
        %1749 = vmatprep.subr.bf16.mxu0 0
        %1750 = vmatpush1.bf16.msra.mxu0 0
        %1751 = vmatprep.mubr.bf16.mxu0 0
        %1752 = vmatmul.mubr.bf16.gmra.mrb[0].mxu0 %v1630
        %v1753 = vpop.f32.mrb[0].mxu0
        %v1754 = vadd.f32 %v1669, %v1753
        %v1755 = vpop.f32.mrb[0].mxu0
        %v1756 = vpop.f32.mrb[0].mxu0
        %v1757 = vadd.f32 %v1669, %v1756
        %v1758 = vpop.f32.mrb[0].mxu0
        %1759 = vmatprep.mubr.bf16.mxu0 0
        %1760 = vmatmul.mubr.bf16.gmra.mrb[0].mxu0 %v1631
        %v1761 = vpop.f32.mrb[0].mxu0
        %v1762 = vadd.f32 %v1669, %v1761
        %v1763 = vpop.f32.mrb[0].mxu0
        %v1764 = vpop.f32.mrb[0].mxu0
        %v1765 = vadd.f32 %v1669, %v1764
        %v1766 = vpop.f32.mrb[0].mxu0
        %1767 = vmatprep.mubr.bf16.mxu0 0
        %1768 = vmatmul.mubr.bf16.gmra.mrb[0].mxu0 %v1632
        %v1769 = vpop.f32.mrb[0].mxu0
        %v1770 = vadd.f32 %v1669, %v1769
        %v1771 = vpop.f32.mrb[0].mxu0
        %v1772 = vpop.f32.mrb[0].mxu0
        %v1773 = vadd.f32 %v1669, %v1772
        %v1774 = vpop.f32.mrb[0].mxu0
        %1775 = vmatprep.mubr.bf16.mxu0 0
        %1776 = vmatmul.mubr.bf16.gmra.mrb[0].mxu0 %v1633
        %v1777 = vpop.f32.mrb[0].mxu0
        %v1778 = vadd.f32 %v1669, %v1777
        %v1779 = vpop.f32.mrb[0].mxu0
        %v1780 = vpop.f32.mrb[0].mxu0
        %v1781 = vadd.f32 %v1669, %v1780
        %v1782 = vpop.f32.mrb[0].mxu0
        %1783 = vmatprep.mubr.bf16.mxu0 0
        %1784 = vmatmul.mubr.bf16.gmra.mrb[0].mxu0 %v1634
        %v1785 = vpop.f32.mrb[0].mxu0
        %v1786 = vadd.f32 %v1669, %v1785
        %v1787 = vpop.f32.mrb[0].mxu0
        %v1788 = vpop.f32.mrb[0].mxu0
        %v1789 = vadd.f32 %v1669, %v1788
        %v1790 = vpop.f32.mrb[0].mxu0
        %1791 = vmatprep.mubr.bf16.mxu0 0
        %1792 = vmatmul.mubr.bf16.gmra.mrb[0].mxu0 %v1635
        %v1793 = vpop.f32.mrb[0].mxu0
        %v1794 = vadd.f32 %v1669, %v1793
        %v1795 = vpop.f32.mrb[0].mxu0
        %v1796 = vpop.f32.mrb[0].mxu0
        %v1797 = vadd.f32 %v1669, %v1796
        %v1798 = vpop.f32.mrb[0].mxu0
        %1799 = vmatprep.mubr.bf16.mxu0 0
        %1800 = vmatmul.mubr.bf16.gmra.mrb[0].mxu0 %v1636
        %v1801 = vpop.f32.mrb[0].mxu0
        %v1802 = vadd.f32 %v1669, %v1801
        %v1803 = vpop.f32.mrb[0].mxu0
        %v1804 = vpop.f32.mrb[0].mxu0
        %v1805 = vadd.f32 %v1669, %v1804
        %v1806 = vpop.f32.mrb[0].mxu0
        %1807 = vmatprep.mubr.bf16.mxu0 0
        %1808 = vmatmul.mubr.bf16.gmra.mrb[0].mxu0 %v1637
        %v1809 = vpop.f32.mrb[0].mxu0
        %v1810 = vadd.f32 %v1669, %v1809
        %v1811 = vpop.f32.mrb[0].mxu0
        %v1812 = vpop.f32.mrb[0].mxu0
        %v1813 = vadd.f32 %v1669, %v1812
        %v1814 = vpop.f32.mrb[0].mxu0
        %1815 = vmatprep.mubr.bf16.mxu0 0
        %1816 = vmatmul.mubr.bf16.gmra.mrb[0].mxu0 %v1638
        %v1817 = vpop.f32.mrb[0].mxu0
        %v1818 = vadd.f32 %v1669, %v1817
        %v1819 = vpop.f32.mrb[0].mxu0
        %v1820 = vpop.f32.mrb[0].mxu0
        %v1821 = vadd.f32 %v1669, %v1820
        %v1822 = vpop.f32.mrb[0].mxu0
        %1823 = vmatprep.mubr.bf16.mxu0 0
        %1824 = vmatmul.mubr.bf16.gmra.mrb[0].mxu0 %v1639
        %v1825 = vpop.f32.mrb[0].mxu0
        %v1826 = vadd.f32 %v1669, %v1825
        %v1827 = vpop.f32.mrb[0].mxu0
        %v1828 = vpop.f32.mrb[0].mxu0
        %v1829 = vadd.f32 %v1669, %v1828
        %v1830 = vpop.f32.mrb[0].mxu0
        %1831 = vmatprep.mubr.bf16.mxu0 0
        %1832 = vmatmul.mubr.bf16.gmra.mrb[0].mxu0 %v1640
        %v1833 = vpop.f32.mrb[0].mxu0
        %v1834 = vadd.f32 %v1669, %v1833
        %v1835 = vpop.f32.mrb[0].mxu0
        %v1836 = vpop.f32.mrb[0].mxu0
        %v1837 = vadd.f32 %v1669, %v1836
        %v1838 = vpop.f32.mrb[0].mxu0
        %1839 = vmatprep.mubr.bf16.mxu0 0
        %1840 = vmatmul.mubr.bf16.gmra.mrb[0].mxu0 %v1641
        %v1841 = vpop.f32.mrb[0].mxu0
        %v1842 = vadd.f32 %v1669, %v1841
        %v1843 = vpop.f32.mrb[0].mxu0
        %v1844 = vpop.f32.mrb[0].mxu0
        %v1845 = vadd.f32 %v1669, %v1844
        %v1846 = vpop.f32.mrb[0].mxu0
        %1847 = vmatprep.mubr.bf16.mxu0 0
        %1848 = vmatmul.mubr.bf16.gmra.mrb[0].mxu0 %v1642
        %v1849 = vpop.f32.mrb[0].mxu0
        %v1850 = vadd.f32 %v1669, %v1849
        %v1851 = vpop.f32.mrb[0].mxu0
        %v1852 = vpop.f32.mrb[0].mxu0
        %v1853 = vadd.f32 %v1669, %v1852
        %v1854 = vpop.f32.mrb[0].mxu0
        %1855 = vmatprep.mubr.bf16.mxu0 0
        %1856 = vmatmul.mubr.bf16.gmra.mrb[0].mxu0 %v1643
        %v1857 = vpop.f32.mrb[0].mxu0
        %v1858 = vadd.f32 %v1669, %v1857
        %v1859 = vpop.f32.mrb[0].mxu0
        %v1860 = vpop.f32.mrb[0].mxu0
        %v1861 = vadd.f32 %v1669, %v1860
        %v1862 = vpop.f32.mrb[0].mxu0
        %1863 = vmatprep.mubr.bf16.mxu0 0
        %1864 = vmatmul.mubr.bf16.gmra.mrb[0].mxu0 %v1644
        %v1865 = vpop.f32.mrb[0].mxu0
        %v1866 = vadd.f32 %v1669, %v1865
        %v1867 = vpop.f32.mrb[0].mxu0
        %v1868 = vpop.f32.mrb[0].mxu0
        %v1869 = vadd.f32 %v1669, %v1868
        %v1870 = vpop.f32.mrb[0].mxu0
        %1871 = vmatprep.mubr.bf16.mxu0 0
        %1872 = vmatmul.mubr.bf16.gmra.mrb[0].mxu0 %v1645
        %v1873 = vpop.f32.mrb[0].mxu0
        %v1874 = vadd.f32 %v1669, %v1873
        %v1875 = vpop.f32.mrb[0].mxu0
        %v1876 = vpop.f32.mrb[0].mxu0
        %v1877 = vadd.f32 %v1669, %v1876
        %v1878 = vpop.f32.mrb[0].mxu0
        %1879 = vdwg.mxu0
        %v1880 = vmax.f32 %v1754, 0.0
        %v1881 = vmax.f32 %v1757, 0.0
        %v1882 = vmax.f32 %v1762, 0.0
        %v1883 = vmax.f32 %v1765, 0.0
        %v1884 = vmax.f32 %v1770, 0.0
        %v1885 = vmax.f32 %v1773, 0.0
        %v1886 = vmax.f32 %v1778, 0.0
        %v1887 = vmax.f32 %v1781, 0.0
        %v1888 = vmax.f32 %v1786, 0.0
        %v1889 = vmax.f32 %v1789, 0.0
        %v1890 = vmax.f32 %v1794, 0.0
        %v1891 = vmax.f32 %v1797, 0.0
        %v1892 = vmax.f32 %v1802, 0.0
        %v1893 = vmax.f32 %v1805, 0.0
        %v1894 = vmax.f32 %v1810, 0.0
        %v1895 = vmax.f32 %v1813, 0.0
        %v1896 = vmax.f32 %v1818, 0.0
        %v1897 = vmax.f32 %v1821, 0.0
        %v1898 = vmax.f32 %v1826, 0.0
        %v1899 = vmax.f32 %v1829, 0.0
        %v1900 = vmax.f32 %v1834, 0.0
        %v1901 = vmax.f32 %v1837, 0.0
        %v1902 = vmax.f32 %v1842, 0.0
        %v1903 = vmax.f32 %v1845, 0.0
        %v1904 = vmax.f32 %v1850, 0.0
        %v1905 = vmax.f32 %v1853, 0.0
        %v1906 = vmax.f32 %v1858, 0.0
        %v1907 = vmax.f32 %v1861, 0.0
        %v1908 = vmax.f32 %v1866, 0.0
        %v1909 = vmax.f32 %v1869, 0.0
        %v1910 = vmax.f32 %v1874, 0.0
        %v1911 = vmax.f32 %v1877, 0.0
        %v1912 = vpack.c.bf16 %v1881, %v1880
        %v1913 = vpack.c.bf16 %v1883, %v1882
        %v1914 = vpack.c.bf16 %v1885, %v1884
        %v1915 = vpack.c.bf16 %v1887, %v1886
        %v1916 = vpack.c.bf16 %v1889, %v1888
        %v1917 = vpack.c.bf16 %v1891, %v1890
        %v1918 = vpack.c.bf16 %v1893, %v1892
        %v1919 = vpack.c.bf16 %v1895, %v1894
        %v1920 = vpack.c.bf16 %v1897, %v1896
        %v1921 = vpack.c.bf16 %v1899, %v1898
        %v1922 = vpack.c.bf16 %v1901, %v1900
        %v1923 = vpack.c.bf16 %v1903, %v1902
        %v1924 = vpack.c.bf16 %v1905, %v1904
        %v1925 = vpack.c.bf16 %v1907, %v1906
        %v1926 = vpack.c.bf16 %v1909, %v1908
        %v1927 = vpack.c.bf16 %v1911, %v1910
        %s1928 = scalar_lea.vmem [#allocation7], 320
        %v1929 = vld [vmem:[%s1928] sm:$0xf]
        %v1930 = vld [vmem:[%s1928 + $0x4] sm:$0xf]
        %v1931 = vld [vmem:[%s1928 + $0x8] sm:$0xf]
        %v1932 = vld [vmem:[%s1928 + $0xc] sm:$0xf]
        %v1933 = vld [vmem:[%s1928 + $0x10] sm:$0xf]
        %v1934 = vld [vmem:[%s1928 + $0x14] sm:$0xf]
        %v1935 = vld [vmem:[%s1928 + $0x18] sm:$0xf]
        %v1936 = vld [vmem:[%s1928 + $0x1c] sm:$0xf]
        %v1937 = vld [vmem:[%s1928 + $0x20] sm:$0xf]
        %v1938 = vld [vmem:[%s1928 + $0x24] sm:$0xf]
        %v1939 = vld [vmem:[%s1928 + $0x28] sm:$0xf]
        %v1940 = vld [vmem:[%s1928 + $0x2c] sm:$0xf]
        %v1941 = vld [vmem:[%s1928 + $0x30] sm:$0xf]
        %v1942 = vld [vmem:[%s1928 + $0x34] sm:$0xf]
        %v1943 = vld [vmem:[%s1928 + $0x38] sm:$0xf]
        %v1944 = vld [vmem:[%s1928 + $0x3c] sm:$0xf]
        %s1945 = scalar_lea.vmem %s3, 5
        %v1946 = vld [vmem:[%s1945] sm:$0x1]
        %v1948 = vlaneseq
        %v1949 = vshrl.u32 %v1948, 7
        %v1950 = vsub.s32 0, %v1949
        %v1951 = vrot.slane %v1946, %v1950
        %v1969 = vunpack.c.l.b16 %v1929
        %v1970 = vunpack.c.l.b16 %v1930
        %v1971 = vunpack.c.l.b16 %v1931
        %v1972 = vunpack.c.l.b16 %v1932
        %v1973 = vunpack.c.l.b16 %v1933
        %v1974 = vunpack.c.l.b16 %v1934
        %v1975 = vunpack.c.l.b16 %v1935
        %v1976 = vunpack.c.l.b16 %v1936
        %v1977 = vunpack.c.l.b16 %v1937
        %v1978 = vunpack.c.l.b16 %v1938
        %v1979 = vunpack.c.l.b16 %v1939
        %v1980 = vunpack.c.l.b16 %v1940
        %v1981 = vunpack.c.l.b16 %v1941
        %v1982 = vunpack.c.l.b16 %v1942
        %v1983 = vunpack.c.l.b16 %v1943
        %v1984 = vunpack.c.l.b16 %v1944
        %v1985 = vpack.c.b16 %v1970, %v1969
        %v1986 = vpack.c.b16 %v1972, %v1971
        %v1987 = vpack.c.b16 %v1974, %v1973
        %v1988 = vpack.c.b16 %v1976, %v1975
        %v1989 = vpack.c.b16 %v1978, %v1977
        %v1990 = vpack.c.b16 %v1980, %v1979
        %v1991 = vpack.c.b16 %v1982, %v1981
        %v1992 = vpack.c.b16 %v1984, %v1983
        %2001 = vmatprep.subr.bf16.mxu0 0
        %2002 = vmatpush1.bf16.msra.mxu0 %v1985
        %2003 = vmatprep.subr.bf16.mxu0 0
        %2004 = vmatpush1.bf16.msra.mxu0 %v1986
        %2005 = vmatprep.subr.bf16.mxu0 0
        %2006 = vmatpush1.bf16.msra.mxu0 %v1987
        %2007 = vmatprep.subr.bf16.mxu0 0
        %2008 = vmatpush1.bf16.msra.mxu0 %v1988
        %2009 = vmatprep.subr.bf16.mxu0 0
        %2010 = vmatpush1.bf16.msra.mxu0 %v1989
        %2011 = vmatprep.subr.bf16.mxu0 0
        %2012 = vmatpush1.bf16.msra.mxu0 %v1990
        %2013 = vmatprep.subr.bf16.mxu0 0
        %2014 = vmatpush1.bf16.msra.mxu0 %v1991
        %2015 = vmatprep.subr.bf16.mxu0 0
        %2016 = vmatpush1.bf16.msra.mxu0 %v1992
        %2017 = vmatprep.subr.bf16.mxu0 0
        %2018 = vmatpush1.bf16.msra.mxu0 0
        %2019 = vmatprep.subr.bf16.mxu0 0
        %2020 = vmatpush1.bf16.msra.mxu0 0
        %2021 = vmatprep.subr.bf16.mxu0 0
        %2022 = vmatpush1.bf16.msra.mxu0 0
        %2023 = vmatprep.subr.bf16.mxu0 0
        %2024 = vmatpush1.bf16.msra.mxu0 0
        %2025 = vmatprep.subr.bf16.mxu0 0
        %2026 = vmatpush1.bf16.msra.mxu0 0
        %2027 = vmatprep.subr.bf16.mxu0 0
        %2028 = vmatpush1.bf16.msra.mxu0 0
        %2029 = vmatprep.subr.bf16.mxu0 0
        %2030 = vmatpush1.bf16.msra.mxu0 0
        %2031 = vmatprep.subr.bf16.mxu0 0
        %2032 = vmatpush1.bf16.msra.mxu0 0
        %2033 = vmatprep.mubr.bf16.mxu0 0
        %2034 = vmatmul.mubr.bf16.gmra.mrb[0].mxu0 %v1912
        %v2035 = vpop.f32.mrb[0].mxu0
        %v2036 = vadd.f32 %v1951, %v2035
        %v2037 = vpop.f32.mrb[0].mxu0
        %v2038 = vpop.f32.mrb[0].mxu0
        %v2039 = vadd.f32 %v1951, %v2038
        %v2040 = vpop.f32.mrb[0].mxu0
        %2041 = vmatprep.mubr.bf16.mxu0 0
        %2042 = vmatmul.mubr.bf16.gmra.mrb[0].mxu0 %v1913
        %v2043 = vpop.f32.mrb[0].mxu0
        %v2044 = vadd.f32 %v1951, %v2043
        %v2045 = vpop.f32.mrb[0].mxu0
        %v2046 = vpop.f32.mrb[0].mxu0
        %v2047 = vadd.f32 %v1951, %v2046
        %v2048 = vpop.f32.mrb[0].mxu0
        %2049 = vmatprep.mubr.bf16.mxu0 0
        %2050 = vmatmul.mubr.bf16.gmra.mrb[0].mxu0 %v1914
        %v2051 = vpop.f32.mrb[0].mxu0
        %v2052 = vadd.f32 %v1951, %v2051
        %v2053 = vpop.f32.mrb[0].mxu0
        %v2054 = vpop.f32.mrb[0].mxu0
        %v2055 = vadd.f32 %v1951, %v2054
        %v2056 = vpop.f32.mrb[0].mxu0
        %2057 = vmatprep.mubr.bf16.mxu0 0
        %2058 = vmatmul.mubr.bf16.gmra.mrb[0].mxu0 %v1915
        %v2059 = vpop.f32.mrb[0].mxu0
        %v2060 = vadd.f32 %v1951, %v2059
        %v2061 = vpop.f32.mrb[0].mxu0
        %v2062 = vpop.f32.mrb[0].mxu0
        %v2063 = vadd.f32 %v1951, %v2062
        %v2064 = vpop.f32.mrb[0].mxu0
        %2065 = vmatprep.mubr.bf16.mxu0 0
        %2066 = vmatmul.mubr.bf16.gmra.mrb[0].mxu0 %v1916
        %v2067 = vpop.f32.mrb[0].mxu0
        %v2068 = vadd.f32 %v1951, %v2067
        %v2069 = vpop.f32.mrb[0].mxu0
        %v2070 = vpop.f32.mrb[0].mxu0
        %v2071 = vadd.f32 %v1951, %v2070
        %v2072 = vpop.f32.mrb[0].mxu0
        %2073 = vmatprep.mubr.bf16.mxu0 0
        %2074 = vmatmul.mubr.bf16.gmra.mrb[0].mxu0 %v1917
        %v2075 = vpop.f32.mrb[0].mxu0
        %v2076 = vadd.f32 %v1951, %v2075
        %v2077 = vpop.f32.mrb[0].mxu0
        %v2078 = vpop.f32.mrb[0].mxu0
        %v2079 = vadd.f32 %v1951, %v2078
        %v2080 = vpop.f32.mrb[0].mxu0
        %2081 = vmatprep.mubr.bf16.mxu0 0
        %2082 = vmatmul.mubr.bf16.gmra.mrb[0].mxu0 %v1918
        %v2083 = vpop.f32.mrb[0].mxu0
        %v2084 = vadd.f32 %v1951, %v2083
        %v2085 = vpop.f32.mrb[0].mxu0
        %v2086 = vpop.f32.mrb[0].mxu0
        %v2087 = vadd.f32 %v1951, %v2086
        %v2088 = vpop.f32.mrb[0].mxu0
        %2089 = vmatprep.mubr.bf16.mxu0 0
        %2090 = vmatmul.mubr.bf16.gmra.mrb[0].mxu0 %v1919
        %v2091 = vpop.f32.mrb[0].mxu0
        %v2092 = vadd.f32 %v1951, %v2091
        %v2093 = vpop.f32.mrb[0].mxu0
        %v2094 = vpop.f32.mrb[0].mxu0
        %v2095 = vadd.f32 %v1951, %v2094
        %v2096 = vpop.f32.mrb[0].mxu0
        %2097 = vmatprep.mubr.bf16.mxu0 0
        %2098 = vmatmul.mubr.bf16.gmra.mrb[0].mxu0 %v1920
        %v2099 = vpop.f32.mrb[0].mxu0
        %v2100 = vadd.f32 %v1951, %v2099
        %v2101 = vpop.f32.mrb[0].mxu0
        %v2102 = vpop.f32.mrb[0].mxu0
        %v2103 = vadd.f32 %v1951, %v2102
        %v2104 = vpop.f32.mrb[0].mxu0
        %2105 = vmatprep.mubr.bf16.mxu0 0
        %2106 = vmatmul.mubr.bf16.gmra.mrb[0].mxu0 %v1921
        %v2107 = vpop.f32.mrb[0].mxu0
        %v2108 = vadd.f32 %v1951, %v2107
        %v2109 = vpop.f32.mrb[0].mxu0
        %v2110 = vpop.f32.mrb[0].mxu0
        %v2111 = vadd.f32 %v1951, %v2110
        %v2112 = vpop.f32.mrb[0].mxu0
        %2113 = vmatprep.mubr.bf16.mxu0 0
        %2114 = vmatmul.mubr.bf16.gmra.mrb[0].mxu0 %v1922
        %v2115 = vpop.f32.mrb[0].mxu0
        %v2116 = vadd.f32 %v1951, %v2115
        %v2117 = vpop.f32.mrb[0].mxu0
        %v2118 = vpop.f32.mrb[0].mxu0
        %v2119 = vadd.f32 %v1951, %v2118
        %v2120 = vpop.f32.mrb[0].mxu0
        %2121 = vmatprep.mubr.bf16.mxu0 0
        %2122 = vmatmul.mubr.bf16.gmra.mrb[0].mxu0 %v1923
        %v2123 = vpop.f32.mrb[0].mxu0
        %v2124 = vadd.f32 %v1951, %v2123
        %v2125 = vpop.f32.mrb[0].mxu0
        %v2126 = vpop.f32.mrb[0].mxu0
        %v2127 = vadd.f32 %v1951, %v2126
        %v2128 = vpop.f32.mrb[0].mxu0
        %2129 = vmatprep.mubr.bf16.mxu0 0
        %2130 = vmatmul.mubr.bf16.gmra.mrb[0].mxu0 %v1924
        %v2131 = vpop.f32.mrb[0].mxu0
        %v2132 = vadd.f32 %v1951, %v2131
        %v2133 = vpop.f32.mrb[0].mxu0
        %v2134 = vpop.f32.mrb[0].mxu0
        %v2135 = vadd.f32 %v1951, %v2134
        %v2136 = vpop.f32.mrb[0].mxu0
        %2137 = vmatprep.mubr.bf16.mxu0 0
        %2138 = vmatmul.mubr.bf16.gmra.mrb[0].mxu0 %v1925
        %v2139 = vpop.f32.mrb[0].mxu0
        %v2140 = vadd.f32 %v1951, %v2139
        %v2141 = vpop.f32.mrb[0].mxu0
        %v2142 = vpop.f32.mrb[0].mxu0
        %v2143 = vadd.f32 %v1951, %v2142
        %v2144 = vpop.f32.mrb[0].mxu0
        %2145 = vmatprep.mubr.bf16.mxu0 0
        %2146 = vmatmul.mubr.bf16.gmra.mrb[0].mxu0 %v1926
        %v2147 = vpop.f32.mrb[0].mxu0
        %v2148 = vadd.f32 %v1951, %v2147
        %v2149 = vpop.f32.mrb[0].mxu0
        %v2150 = vpop.f32.mrb[0].mxu0
        %v2151 = vadd.f32 %v1951, %v2150
        %v2152 = vpop.f32.mrb[0].mxu0
        %2153 = vmatprep.mubr.bf16.mxu0 0
        %2154 = vmatmul.mubr.bf16.gmra.mrb[0].mxu0 %v1927
        %v2155 = vpop.f32.mrb[0].mxu0
        %v2156 = vadd.f32 %v1951, %v2155
        %v2157 = vpop.f32.mrb[0].mxu0
        %v2158 = vpop.f32.mrb[0].mxu0
        %v2159 = vadd.f32 %v1951, %v2158
        %v2160 = vpop.f32.mrb[0].mxu0
        %2161 = vdwg.mxu0
        %v2162 = vmax.f32 %v2036, 0.0
        %v2163 = vmax.f32 %v2039, 0.0
        %v2164 = vmax.f32 %v2044, 0.0
        %v2165 = vmax.f32 %v2047, 0.0
        %v2166 = vmax.f32 %v2052, 0.0
        %v2167 = vmax.f32 %v2055, 0.0
        %v2168 = vmax.f32 %v2060, 0.0
        %v2169 = vmax.f32 %v2063, 0.0
        %v2170 = vmax.f32 %v2068, 0.0
        %v2171 = vmax.f32 %v2071, 0.0
        %v2172 = vmax.f32 %v2076, 0.0
        %v2173 = vmax.f32 %v2079, 0.0
        %v2174 = vmax.f32 %v2084, 0.0
        %v2175 = vmax.f32 %v2087, 0.0
        %v2176 = vmax.f32 %v2092, 0.0
        %v2177 = vmax.f32 %v2095, 0.0
        %v2178 = vmax.f32 %v2100, 0.0
        %v2179 = vmax.f32 %v2103, 0.0
        %v2180 = vmax.f32 %v2108, 0.0
        %v2181 = vmax.f32 %v2111, 0.0
        %v2182 = vmax.f32 %v2116, 0.0
        %v2183 = vmax.f32 %v2119, 0.0
        %v2184 = vmax.f32 %v2124, 0.0
        %v2185 = vmax.f32 %v2127, 0.0
        %v2186 = vmax.f32 %v2132, 0.0
        %v2187 = vmax.f32 %v2135, 0.0
        %v2188 = vmax.f32 %v2140, 0.0
        %v2189 = vmax.f32 %v2143, 0.0
        %v2190 = vmax.f32 %v2148, 0.0
        %v2191 = vmax.f32 %v2151, 0.0
        %v2192 = vmax.f32 %v2156, 0.0
        %v2193 = vmax.f32 %v2159, 0.0
        %v2194 = vpack.c.bf16 %v2163, %v2162
        %v2195 = vpack.c.bf16 %v2165, %v2164
        %v2196 = vpack.c.bf16 %v2167, %v2166
        %v2197 = vpack.c.bf16 %v2169, %v2168
        %v2198 = vpack.c.bf16 %v2171, %v2170
        %v2199 = vpack.c.bf16 %v2173, %v2172
        %v2200 = vpack.c.bf16 %v2175, %v2174
        %v2201 = vpack.c.bf16 %v2177, %v2176
        %v2202 = vpack.c.bf16 %v2179, %v2178
        %v2203 = vpack.c.bf16 %v2181, %v2180
        %v2204 = vpack.c.bf16 %v2183, %v2182
        %v2205 = vpack.c.bf16 %v2185, %v2184
        %v2206 = vpack.c.bf16 %v2187, %v2186
        %v2207 = vpack.c.bf16 %v2189, %v2188
        %v2208 = vpack.c.bf16 %v2191, %v2190
        %v2209 = vpack.c.bf16 %v2193, %v2192
        %s2210 = scalar_lea.vmem [#allocation7], 384
        %v2211 = vld [vmem:[%s2210] sm:$0xf]
        %v2212 = vld [vmem:[%s2210 + $0x4] sm:$0xf]
        %v2213 = vld [vmem:[%s2210 + $0x8] sm:$0xf]
        %v2214 = vld [vmem:[%s2210 + $0xc] sm:$0xf]
        %v2215 = vld [vmem:[%s2210 + $0x10] sm:$0xf]
        %v2216 = vld [vmem:[%s2210 + $0x14] sm:$0xf]
        %v2217 = vld [vmem:[%s2210 + $0x18] sm:$0xf]
        %v2218 = vld [vmem:[%s2210 + $0x1c] sm:$0xf]
        %v2219 = vld [vmem:[%s2210 + $0x20] sm:$0xf]
        %v2220 = vld [vmem:[%s2210 + $0x24] sm:$0xf]
        %v2221 = vld [vmem:[%s2210 + $0x28] sm:$0xf]
        %v2222 = vld [vmem:[%s2210 + $0x2c] sm:$0xf]
        %v2223 = vld [vmem:[%s2210 + $0x30] sm:$0xf]
        %v2224 = vld [vmem:[%s2210 + $0x34] sm:$0xf]
        %v2225 = vld [vmem:[%s2210 + $0x38] sm:$0xf]
        %v2226 = vld [vmem:[%s2210 + $0x3c] sm:$0xf]
        %s2227 = scalar_lea.vmem %s3, 6
        %v2228 = vld [vmem:[%s2227] sm:$0x1]
        %v2230 = vlaneseq
        %v2231 = vshrl.u32 %v2230, 7
        %v2232 = vsub.s32 0, %v2231
        %v2233 = vrot.slane %v2228, %v2232
        %v2251 = vunpack.c.l.b16 %v2211
        %v2252 = vunpack.c.l.b16 %v2212
        %v2253 = vunpack.c.l.b16 %v2213
        %v2254 = vunpack.c.l.b16 %v2214
        %v2255 = vunpack.c.l.b16 %v2215
        %v2256 = vunpack.c.l.b16 %v2216
        %v2257 = vunpack.c.l.b16 %v2217
        %v2258 = vunpack.c.l.b16 %v2218
        %v2259 = vunpack.c.l.b16 %v2219
        %v2260 = vunpack.c.l.b16 %v2220
        %v2261 = vunpack.c.l.b16 %v2221
        %v2262 = vunpack.c.l.b16 %v2222
        %v2263 = vunpack.c.l.b16 %v2223
        %v2264 = vunpack.c.l.b16 %v2224
        %v2265 = vunpack.c.l.b16 %v2225
        %v2266 = vunpack.c.l.b16 %v2226
        %v2267 = vpack.c.b16 %v2252, %v2251
        %v2268 = vpack.c.b16 %v2254, %v2253
        %v2269 = vpack.c.b16 %v2256, %v2255
        %v2270 = vpack.c.b16 %v2258, %v2257
        %v2271 = vpack.c.b16 %v2260, %v2259
        %v2272 = vpack.c.b16 %v2262, %v2261
        %v2273 = vpack.c.b16 %v2264, %v2263
        %v2274 = vpack.c.b16 %v2266, %v2265
        %2283 = vmatprep.subr.bf16.mxu0 0
        %2284 = vmatpush1.bf16.msra.mxu0 %v2267
        %2285 = vmatprep.subr.bf16.mxu0 0
        %2286 = vmatpush1.bf16.msra.mxu0 %v2268
        %2287 = vmatprep.subr.bf16.mxu0 0
        %2288 = vmatpush1.bf16.msra.mxu0 %v2269
        %2289 = vmatprep.subr.bf16.mxu0 0
        %2290 = vmatpush1.bf16.msra.mxu0 %v2270
        %2291 = vmatprep.subr.bf16.mxu0 0
        %2292 = vmatpush1.bf16.msra.mxu0 %v2271
        %2293 = vmatprep.subr.bf16.mxu0 0
        %2294 = vmatpush1.bf16.msra.mxu0 %v2272
        %2295 = vmatprep.subr.bf16.mxu0 0
        %2296 = vmatpush1.bf16.msra.mxu0 %v2273
        %2297 = vmatprep.subr.bf16.mxu0 0
        %2298 = vmatpush1.bf16.msra.mxu0 %v2274
        %2299 = vmatprep.subr.bf16.mxu0 0
        %2300 = vmatpush1.bf16.msra.mxu0 0
        %2301 = vmatprep.subr.bf16.mxu0 0
        %2302 = vmatpush1.bf16.msra.mxu0 0
        %2303 = vmatprep.subr.bf16.mxu0 0
        %2304 = vmatpush1.bf16.msra.mxu0 0
        %2305 = vmatprep.subr.bf16.mxu0 0
        %2306 = vmatpush1.bf16.msra.mxu0 0
        %2307 = vmatprep.subr.bf16.mxu0 0
        %2308 = vmatpush1.bf16.msra.mxu0 0
        %2309 = vmatprep.subr.bf16.mxu0 0
        %2310 = vmatpush1.bf16.msra.mxu0 0
        %2311 = vmatprep.subr.bf16.mxu0 0
        %2312 = vmatpush1.bf16.msra.mxu0 0
        %2313 = vmatprep.subr.bf16.mxu0 0
        %2314 = vmatpush1.bf16.msra.mxu0 0
        %2315 = vmatprep.mubr.bf16.mxu0 0
        %2316 = vmatmul.mubr.bf16.gmra.mrb[0].mxu0 %v2194
        %v2317 = vpop.f32.mrb[0].mxu0
        %v2318 = vadd.f32 %v2233, %v2317
        %v2319 = vpop.f32.mrb[0].mxu0
        %v2320 = vpop.f32.mrb[0].mxu0
        %v2321 = vadd.f32 %v2233, %v2320
        %v2322 = vpop.f32.mrb[0].mxu0
        %2323 = vmatprep.mubr.bf16.mxu0 0
        %2324 = vmatmul.mubr.bf16.gmra.mrb[0].mxu0 %v2195
        %v2325 = vpop.f32.mrb[0].mxu0
        %v2326 = vadd.f32 %v2233, %v2325
        %v2327 = vpop.f32.mrb[0].mxu0
        %v2328 = vpop.f32.mrb[0].mxu0
        %v2329 = vadd.f32 %v2233, %v2328
        %v2330 = vpop.f32.mrb[0].mxu0
        %2331 = vmatprep.mubr.bf16.mxu0 0
        %2332 = vmatmul.mubr.bf16.gmra.mrb[0].mxu0 %v2196
        %v2333 = vpop.f32.mrb[0].mxu0
        %v2334 = vadd.f32 %v2233, %v2333
        %v2335 = vpop.f32.mrb[0].mxu0
        %v2336 = vpop.f32.mrb[0].mxu0
        %v2337 = vadd.f32 %v2233, %v2336
        %v2338 = vpop.f32.mrb[0].mxu0
        %2339 = vmatprep.mubr.bf16.mxu0 0
        %2340 = vmatmul.mubr.bf16.gmra.mrb[0].mxu0 %v2197
        %v2341 = vpop.f32.mrb[0].mxu0
        %v2342 = vadd.f32 %v2233, %v2341
        %v2343 = vpop.f32.mrb[0].mxu0
        %v2344 = vpop.f32.mrb[0].mxu0
        %v2345 = vadd.f32 %v2233, %v2344
        %v2346 = vpop.f32.mrb[0].mxu0
        %2347 = vmatprep.mubr.bf16.mxu0 0
        %2348 = vmatmul.mubr.bf16.gmra.mrb[0].mxu0 %v2198
        %v2349 = vpop.f32.mrb[0].mxu0
        %v2350 = vadd.f32 %v2233, %v2349
        %v2351 = vpop.f32.mrb[0].mxu0
        %v2352 = vpop.f32.mrb[0].mxu0
        %v2353 = vadd.f32 %v2233, %v2352
        %v2354 = vpop.f32.mrb[0].mxu0
        %2355 = vmatprep.mubr.bf16.mxu0 0
        %2356 = vmatmul.mubr.bf16.gmra.mrb[0].mxu0 %v2199
        %v2357 = vpop.f32.mrb[0].mxu0
        %v2358 = vadd.f32 %v2233, %v2357
        %v2359 = vpop.f32.mrb[0].mxu0
        %v2360 = vpop.f32.mrb[0].mxu0
        %v2361 = vadd.f32 %v2233, %v2360
        %v2362 = vpop.f32.mrb[0].mxu0
        %2363 = vmatprep.mubr.bf16.mxu0 0
        %2364 = vmatmul.mubr.bf16.gmra.mrb[0].mxu0 %v2200
        %v2365 = vpop.f32.mrb[0].mxu0
        %v2366 = vadd.f32 %v2233, %v2365
        %v2367 = vpop.f32.mrb[0].mxu0
        %v2368 = vpop.f32.mrb[0].mxu0
        %v2369 = vadd.f32 %v2233, %v2368
        %v2370 = vpop.f32.mrb[0].mxu0
        %2371 = vmatprep.mubr.bf16.mxu0 0
        %2372 = vmatmul.mubr.bf16.gmra.mrb[0].mxu0 %v2201
        %v2373 = vpop.f32.mrb[0].mxu0
        %v2374 = vadd.f32 %v2233, %v2373
        %v2375 = vpop.f32.mrb[0].mxu0
        %v2376 = vpop.f32.mrb[0].mxu0
        %v2377 = vadd.f32 %v2233, %v2376
        %v2378 = vpop.f32.mrb[0].mxu0
        %2379 = vmatprep.mubr.bf16.mxu0 0
        %2380 = vmatmul.mubr.bf16.gmra.mrb[0].mxu0 %v2202
        %v2381 = vpop.f32.mrb[0].mxu0
        %v2382 = vadd.f32 %v2233, %v2381
        %v2383 = vpop.f32.mrb[0].mxu0
        %v2384 = vpop.f32.mrb[0].mxu0
        %v2385 = vadd.f32 %v2233, %v2384
        %v2386 = vpop.f32.mrb[0].mxu0
        %2387 = vmatprep.mubr.bf16.mxu0 0
        %2388 = vmatmul.mubr.bf16.gmra.mrb[0].mxu0 %v2203
        %v2389 = vpop.f32.mrb[0].mxu0
        %v2390 = vadd.f32 %v2233, %v2389
        %v2391 = vpop.f32.mrb[0].mxu0
        %v2392 = vpop.f32.mrb[0].mxu0
        %v2393 = vadd.f32 %v2233, %v2392
        %v2394 = vpop.f32.mrb[0].mxu0
        %2395 = vmatprep.mubr.bf16.mxu0 0
        %2396 = vmatmul.mubr.bf16.gmra.mrb[0].mxu0 %v2204
        %v2397 = vpop.f32.mrb[0].mxu0
        %v2398 = vadd.f32 %v2233, %v2397
        %v2399 = vpop.f32.mrb[0].mxu0
        %v2400 = vpop.f32.mrb[0].mxu0
        %v2401 = vadd.f32 %v2233, %v2400
        %v2402 = vpop.f32.mrb[0].mxu0
        %2403 = vmatprep.mubr.bf16.mxu0 0
        %2404 = vmatmul.mubr.bf16.gmra.mrb[0].mxu0 %v2205
        %v2405 = vpop.f32.mrb[0].mxu0
        %v2406 = vadd.f32 %v2233, %v2405
        %v2407 = vpop.f32.mrb[0].mxu0
        %v2408 = vpop.f32.mrb[0].mxu0
        %v2409 = vadd.f32 %v2233, %v2408
        %v2410 = vpop.f32.mrb[0].mxu0
        %2411 = vmatprep.mubr.bf16.mxu0 0
        %2412 = vmatmul.mubr.bf16.gmra.mrb[0].mxu0 %v2206
        %v2413 = vpop.f32.mrb[0].mxu0
        %v2414 = vadd.f32 %v2233, %v2413
        %v2415 = vpop.f32.mrb[0].mxu0
        %v2416 = vpop.f32.mrb[0].mxu0
        %v2417 = vadd.f32 %v2233, %v2416
        %v2418 = vpop.f32.mrb[0].mxu0
        %2419 = vmatprep.mubr.bf16.mxu0 0
        %2420 = vmatmul.mubr.bf16.gmra.mrb[0].mxu0 %v2207
        %v2421 = vpop.f32.mrb[0].mxu0
        %v2422 = vadd.f32 %v2233, %v2421
        %v2423 = vpop.f32.mrb[0].mxu0
        %v2424 = vpop.f32.mrb[0].mxu0
        %v2425 = vadd.f32 %v2233, %v2424
        %v2426 = vpop.f32.mrb[0].mxu0
        %2427 = vmatprep.mubr.bf16.mxu0 0
        %2428 = vmatmul.mubr.bf16.gmra.mrb[0].mxu0 %v2208
        %v2429 = vpop.f32.mrb[0].mxu0
        %v2430 = vadd.f32 %v2233, %v2429
        %v2431 = vpop.f32.mrb[0].mxu0
        %v2432 = vpop.f32.mrb[0].mxu0
        %v2433 = vadd.f32 %v2233, %v2432
        %v2434 = vpop.f32.mrb[0].mxu0
        %2435 = vmatprep.mubr.bf16.mxu0 0
        %2436 = vmatmul.mubr.bf16.gmra.mrb[0].mxu0 %v2209
        %v2437 = vpop.f32.mrb[0].mxu0
        %v2438 = vadd.f32 %v2233, %v2437
        %v2439 = vpop.f32.mrb[0].mxu0
        %v2440 = vpop.f32.mrb[0].mxu0
        %v2441 = vadd.f32 %v2233, %v2440
        %v2442 = vpop.f32.mrb[0].mxu0
        %2443 = vdwg.mxu0
        %v2444 = vmax.f32 %v2318, 0.0
        %v2445 = vmax.f32 %v2321, 0.0
        %v2446 = vmax.f32 %v2326, 0.0
        %v2447 = vmax.f32 %v2329, 0.0
        %v2448 = vmax.f32 %v2334, 0.0
        %v2449 = vmax.f32 %v2337, 0.0
        %v2450 = vmax.f32 %v2342, 0.0
        %v2451 = vmax.f32 %v2345, 0.0
        %v2452 = vmax.f32 %v2350, 0.0
        %v2453 = vmax.f32 %v2353, 0.0
        %v2454 = vmax.f32 %v2358, 0.0
        %v2455 = vmax.f32 %v2361, 0.0
        %v2456 = vmax.f32 %v2366, 0.0
        %v2457 = vmax.f32 %v2369, 0.0
        %v2458 = vmax.f32 %v2374, 0.0
        %v2459 = vmax.f32 %v2377, 0.0
        %v2460 = vmax.f32 %v2382, 0.0
        %v2461 = vmax.f32 %v2385, 0.0
        %v2462 = vmax.f32 %v2390, 0.0
        %v2463 = vmax.f32 %v2393, 0.0
        %v2464 = vmax.f32 %v2398, 0.0
        %v2465 = vmax.f32 %v2401, 0.0
        %v2466 = vmax.f32 %v2406, 0.0
        %v2467 = vmax.f32 %v2409, 0.0
        %v2468 = vmax.f32 %v2414, 0.0
        %v2469 = vmax.f32 %v2417, 0.0
        %v2470 = vmax.f32 %v2422, 0.0
        %v2471 = vmax.f32 %v2425, 0.0
        %v2472 = vmax.f32 %v2430, 0.0
        %v2473 = vmax.f32 %v2433, 0.0
        %v2474 = vmax.f32 %v2438, 0.0
        %v2475 = vmax.f32 %v2441, 0.0
        %v2476 = vpack.c.bf16 %v2445, %v2444
        %v2477 = vpack.c.bf16 %v2447, %v2446
        %v2478 = vpack.c.bf16 %v2449, %v2448
        %v2479 = vpack.c.bf16 %v2451, %v2450
        %v2480 = vpack.c.bf16 %v2453, %v2452
        %v2481 = vpack.c.bf16 %v2455, %v2454
        %v2482 = vpack.c.bf16 %v2457, %v2456
        %v2483 = vpack.c.bf16 %v2459, %v2458
        %v2484 = vpack.c.bf16 %v2461, %v2460
        %v2485 = vpack.c.bf16 %v2463, %v2462
        %v2486 = vpack.c.bf16 %v2465, %v2464
        %v2487 = vpack.c.bf16 %v2467, %v2466
        %v2488 = vpack.c.bf16 %v2469, %v2468
        %v2489 = vpack.c.bf16 %v2471, %v2470
        %v2490 = vpack.c.bf16 %v2473, %v2472
        %v2491 = vpack.c.bf16 %v2475, %v2474
        %s2492 = scalar_lea.vmem [#allocation7], 448
        %v2493 = vld [vmem:[%s2492] sm:$0xf]
        %v2494 = vld [vmem:[%s2492 + $0x4] sm:$0xf]
        %v2495 = vld [vmem:[%s2492 + $0x8] sm:$0xf]
        %v2496 = vld [vmem:[%s2492 + $0xc] sm:$0xf]
        %v2497 = vld [vmem:[%s2492 + $0x10] sm:$0xf]
        %v2498 = vld [vmem:[%s2492 + $0x14] sm:$0xf]
        %v2499 = vld [vmem:[%s2492 + $0x18] sm:$0xf]
        %v2500 = vld [vmem:[%s2492 + $0x1c] sm:$0xf]
        %v2501 = vld [vmem:[%s2492 + $0x20] sm:$0xf]
        %v2502 = vld [vmem:[%s2492 + $0x24] sm:$0xf]
        %v2503 = vld [vmem:[%s2492 + $0x28] sm:$0xf]
        %v2504 = vld [vmem:[%s2492 + $0x2c] sm:$0xf]
        %v2505 = vld [vmem:[%s2492 + $0x30] sm:$0xf]
        %v2506 = vld [vmem:[%s2492 + $0x34] sm:$0xf]
        %v2507 = vld [vmem:[%s2492 + $0x38] sm:$0xf]
        %v2508 = vld [vmem:[%s2492 + $0x3c] sm:$0xf]
        %s2509 = scalar_lea.vmem %s3, 7
        %v2510 = vld [vmem:[%s2509] sm:$0x1]
        %v2512 = vlaneseq
        %v2513 = vshrl.u32 %v2512, 7
        %v2514 = vsub.s32 0, %v2513
        %v2515 = vrot.slane %v2510, %v2514
        %v2533 = vunpack.c.l.b16 %v2493
        %v2534 = vunpack.c.l.b16 %v2494
        %v2535 = vunpack.c.l.b16 %v2495
        %v2536 = vunpack.c.l.b16 %v2496
        %v2537 = vunpack.c.l.b16 %v2497
        %v2538 = vunpack.c.l.b16 %v2498
        %v2539 = vunpack.c.l.b16 %v2499
        %v2540 = vunpack.c.l.b16 %v2500
        %v2541 = vunpack.c.l.b16 %v2501
        %v2542 = vunpack.c.l.b16 %v2502
        %v2543 = vunpack.c.l.b16 %v2503
        %v2544 = vunpack.c.l.b16 %v2504
        %v2545 = vunpack.c.l.b16 %v2505
        %v2546 = vunpack.c.l.b16 %v2506
        %v2547 = vunpack.c.l.b16 %v2507
        %v2548 = vunpack.c.l.b16 %v2508
        %v2549 = vpack.c.b16 %v2534, %v2533
        %v2550 = vpack.c.b16 %v2536, %v2535
        %v2551 = vpack.c.b16 %v2538, %v2537
        %v2552 = vpack.c.b16 %v2540, %v2539
        %v2553 = vpack.c.b16 %v2542, %v2541
        %v2554 = vpack.c.b16 %v2544, %v2543
        %v2555 = vpack.c.b16 %v2546, %v2545
        %v2556 = vpack.c.b16 %v2548, %v2547
        %2565 = vmatprep.subr.bf16.mxu0 0
        %2566 = vmatpush1.bf16.msra.mxu0 %v2549
        %2567 = vmatprep.subr.bf16.mxu0 0
        %2568 = vmatpush1.bf16.msra.mxu0 %v2550
        %2569 = vmatprep.subr.bf16.mxu0 0
        %2570 = vmatpush1.bf16.msra.mxu0 %v2551
        %2571 = vmatprep.subr.bf16.mxu0 0
        %2572 = vmatpush1.bf16.msra.mxu0 %v2552
        %2573 = vmatprep.subr.bf16.mxu0 0
        %2574 = vmatpush1.bf16.msra.mxu0 %v2553
        %2575 = vmatprep.subr.bf16.mxu0 0
        %2576 = vmatpush1.bf16.msra.mxu0 %v2554
        %2577 = vmatprep.subr.bf16.mxu0 0
        %2578 = vmatpush1.bf16.msra.mxu0 %v2555
        %2579 = vmatprep.subr.bf16.mxu0 0
        %2580 = vmatpush1.bf16.msra.mxu0 %v2556
        %2581 = vmatprep.subr.bf16.mxu0 0
        %2582 = vmatpush1.bf16.msra.mxu0 0
        %2583 = vmatprep.subr.bf16.mxu0 0
        %2584 = vmatpush1.bf16.msra.mxu0 0
        %2585 = vmatprep.subr.bf16.mxu0 0
        %2586 = vmatpush1.bf16.msra.mxu0 0
        %2587 = vmatprep.subr.bf16.mxu0 0
        %2588 = vmatpush1.bf16.msra.mxu0 0
        %2589 = vmatprep.subr.bf16.mxu0 0
        %2590 = vmatpush1.bf16.msra.mxu0 0
        %2591 = vmatprep.subr.bf16.mxu0 0
        %2592 = vmatpush1.bf16.msra.mxu0 0
        %2593 = vmatprep.subr.bf16.mxu0 0
        %2594 = vmatpush1.bf16.msra.mxu0 0
        %2595 = vmatprep.subr.bf16.mxu0 0
        %2596 = vmatpush1.bf16.msra.mxu0 0
        %2597 = vmatprep.mubr.bf16.mxu0 0
        %2598 = vmatmul.mubr.bf16.gmra.mrb[0].mxu0 %v2476
        %v2599 = vpop.f32.mrb[0].mxu0
        %v2600 = vadd.f32 %v2515, %v2599
        %v2601 = vpop.f32.mrb[0].mxu0
        %v2602 = vpop.f32.mrb[0].mxu0
        %v2603 = vadd.f32 %v2515, %v2602
        %v2604 = vpop.f32.mrb[0].mxu0
        %2605 = vmatprep.mubr.bf16.mxu0 0
        %2606 = vmatmul.mubr.bf16.gmra.mrb[0].mxu0 %v2477
        %v2607 = vpop.f32.mrb[0].mxu0
        %v2608 = vadd.f32 %v2515, %v2607
        %v2609 = vpop.f32.mrb[0].mxu0
        %v2610 = vpop.f32.mrb[0].mxu0
        %v2611 = vadd.f32 %v2515, %v2610
        %v2612 = vpop.f32.mrb[0].mxu0
        %2613 = vmatprep.mubr.bf16.mxu0 0
        %2614 = vmatmul.mubr.bf16.gmra.mrb[0].mxu0 %v2478
        %v2615 = vpop.f32.mrb[0].mxu0
        %v2616 = vadd.f32 %v2515, %v2615
        %v2617 = vpop.f32.mrb[0].mxu0
        %v2618 = vpop.f32.mrb[0].mxu0
        %v2619 = vadd.f32 %v2515, %v2618
        %v2620 = vpop.f32.mrb[0].mxu0
        %2621 = vmatprep.mubr.bf16.mxu0 0
        %2622 = vmatmul.mubr.bf16.gmra.mrb[0].mxu0 %v2479
        %v2623 = vpop.f32.mrb[0].mxu0
        %v2624 = vadd.f32 %v2515, %v2623
        %v2625 = vpop.f32.mrb[0].mxu0
        %v2626 = vpop.f32.mrb[0].mxu0
        %v2627 = vadd.f32 %v2515, %v2626
        %v2628 = vpop.f32.mrb[0].mxu0
        %2629 = vmatprep.mubr.bf16.mxu0 0
        %2630 = vmatmul.mubr.bf16.gmra.mrb[0].mxu0 %v2480
        %v2631 = vpop.f32.mrb[0].mxu0
        %v2632 = vadd.f32 %v2515, %v2631
        %v2633 = vpop.f32.mrb[0].mxu0
        %v2634 = vpop.f32.mrb[0].mxu0
        %v2635 = vadd.f32 %v2515, %v2634
        %v2636 = vpop.f32.mrb[0].mxu0
        %2637 = vmatprep.mubr.bf16.mxu0 0
        %2638 = vmatmul.mubr.bf16.gmra.mrb[0].mxu0 %v2481
        %v2639 = vpop.f32.mrb[0].mxu0
        %v2640 = vadd.f32 %v2515, %v2639
        %v2641 = vpop.f32.mrb[0].mxu0
        %v2642 = vpop.f32.mrb[0].mxu0
        %v2643 = vadd.f32 %v2515, %v2642
        %v2644 = vpop.f32.mrb[0].mxu0
        %2645 = vmatprep.mubr.bf16.mxu0 0
        %2646 = vmatmul.mubr.bf16.gmra.mrb[0].mxu0 %v2482
        %v2647 = vpop.f32.mrb[0].mxu0
        %v2648 = vadd.f32 %v2515, %v2647
        %v2649 = vpop.f32.mrb[0].mxu0
        %v2650 = vpop.f32.mrb[0].mxu0
        %v2651 = vadd.f32 %v2515, %v2650
        %v2652 = vpop.f32.mrb[0].mxu0
        %2653 = vmatprep.mubr.bf16.mxu0 0
        %2654 = vmatmul.mubr.bf16.gmra.mrb[0].mxu0 %v2483
        %v2655 = vpop.f32.mrb[0].mxu0
        %v2656 = vadd.f32 %v2515, %v2655
        %v2657 = vpop.f32.mrb[0].mxu0
        %v2658 = vpop.f32.mrb[0].mxu0
        %v2659 = vadd.f32 %v2515, %v2658
        %v2660 = vpop.f32.mrb[0].mxu0
        %2661 = vmatprep.mubr.bf16.mxu0 0
        %2662 = vmatmul.mubr.bf16.gmra.mrb[0].mxu0 %v2484
        %v2663 = vpop.f32.mrb[0].mxu0
        %v2664 = vadd.f32 %v2515, %v2663
        %v2665 = vpop.f32.mrb[0].mxu0
        %v2666 = vpop.f32.mrb[0].mxu0
        %v2667 = vadd.f32 %v2515, %v2666
        %v2668 = vpop.f32.mrb[0].mxu0
        %2669 = vmatprep.mubr.bf16.mxu0 0
        %2670 = vmatmul.mubr.bf16.gmra.mrb[0].mxu0 %v2485
        %v2671 = vpop.f32.mrb[0].mxu0
        %v2672 = vadd.f32 %v2515, %v2671
        %v2673 = vpop.f32.mrb[0].mxu0
        %v2674 = vpop.f32.mrb[0].mxu0
        %v2675 = vadd.f32 %v2515, %v2674
        %v2676 = vpop.f32.mrb[0].mxu0
        %2677 = vmatprep.mubr.bf16.mxu0 0
        %2678 = vmatmul.mubr.bf16.gmra.mrb[0].mxu0 %v2486
        %v2679 = vpop.f32.mrb[0].mxu0
        %v2680 = vadd.f32 %v2515, %v2679
        %v2681 = vpop.f32.mrb[0].mxu0
        %v2682 = vpop.f32.mrb[0].mxu0
        %v2683 = vadd.f32 %v2515, %v2682
        %v2684 = vpop.f32.mrb[0].mxu0
        %2685 = vmatprep.mubr.bf16.mxu0 0
        %2686 = vmatmul.mubr.bf16.gmra.mrb[0].mxu0 %v2487
        %v2687 = vpop.f32.mrb[0].mxu0
        %v2688 = vadd.f32 %v2515, %v2687
        %v2689 = vpop.f32.mrb[0].mxu0
        %v2690 = vpop.f32.mrb[0].mxu0
        %v2691 = vadd.f32 %v2515, %v2690
        %v2692 = vpop.f32.mrb[0].mxu0
        %2693 = vmatprep.mubr.bf16.mxu0 0
        %2694 = vmatmul.mubr.bf16.gmra.mrb[0].mxu0 %v2488
        %v2695 = vpop.f32.mrb[0].mxu0
        %v2696 = vadd.f32 %v2515, %v2695
        %v2697 = vpop.f32.mrb[0].mxu0
        %v2698 = vpop.f32.mrb[0].mxu0
        %v2699 = vadd.f32 %v2515, %v2698
        %v2700 = vpop.f32.mrb[0].mxu0
        %2701 = vmatprep.mubr.bf16.mxu0 0
        %2702 = vmatmul.mubr.bf16.gmra.mrb[0].mxu0 %v2489
        %v2703 = vpop.f32.mrb[0].mxu0
        %v2704 = vadd.f32 %v2515, %v2703
        %v2705 = vpop.f32.mrb[0].mxu0
        %v2706 = vpop.f32.mrb[0].mxu0
        %v2707 = vadd.f32 %v2515, %v2706
        %v2708 = vpop.f32.mrb[0].mxu0
        %2709 = vmatprep.mubr.bf16.mxu0 0
        %2710 = vmatmul.mubr.bf16.gmra.mrb[0].mxu0 %v2490
        %v2711 = vpop.f32.mrb[0].mxu0
        %v2712 = vadd.f32 %v2515, %v2711
        %v2713 = vpop.f32.mrb[0].mxu0
        %v2714 = vpop.f32.mrb[0].mxu0
        %v2715 = vadd.f32 %v2515, %v2714
        %v2716 = vpop.f32.mrb[0].mxu0
        %2717 = vmatprep.mubr.bf16.mxu0 0
        %2718 = vmatmul.mubr.bf16.gmra.mrb[0].mxu0 %v2491
        %v2719 = vpop.f32.mrb[0].mxu0
        %v2720 = vadd.f32 %v2515, %v2719
        %v2721 = vpop.f32.mrb[0].mxu0
        %v2722 = vpop.f32.mrb[0].mxu0
        %v2723 = vadd.f32 %v2515, %v2722
        %v2724 = vpop.f32.mrb[0].mxu0
        %2725 = vdwg.mxu0
        %2726 = vst [vmem:[%s269] sm:$0xff] %v2600
        %2727 = vst [vmem:[%s269 + $0x8] sm:$0xff] %v2603
        %2728 = vst [vmem:[%s269 + $0x10] sm:$0xff] %v2608
        %2729 = vst [vmem:[%s269 + $0x18] sm:$0xff] %v2611
        %2730 = vst [vmem:[%s269 + $0x20] sm:$0xff] %v2616
        %2731 = vst [vmem:[%s269 + $0x28] sm:$0xff] %v2619
        %2732 = vst [vmem:[%s269 + $0x30] sm:$0xff] %v2624
        %2733 = vst [vmem:[%s269 + $0x38] sm:$0xff] %v2627
        %2734 = vst [vmem:[%s269 + $0x40] sm:$0xff] %v2632
        %2735 = vst [vmem:[%s269 + $0x48] sm:$0xff] %v2635
        %2736 = vst [vmem:[%s269 + $0x50] sm:$0xff] %v2640
        %2737 = vst [vmem:[%s269 + $0x58] sm:$0xff] %v2643
        %2738 = vst [vmem:[%s269 + $0x60] sm:$0xff] %v2648
        %2739 = vst [vmem:[%s269 + $0x68] sm:$0xff] %v2651
        %2740 = vst [vmem:[%s269 + $0x70] sm:$0xff] %v2656
        %2741 = vst [vmem:[%s269 + $0x78] sm:$0xff] %v2659
        %2742 = vst [vmem:[%s269 + $0x80] sm:$0xff] %v2664
        %2743 = vst [vmem:[%s269 + $0x88] sm:$0xff] %v2667
        %2744 = vst [vmem:[%s269 + $0x90] sm:$0xff] %v2672
        %2745 = vst [vmem:[%s269 + $0x98] sm:$0xff] %v2675
        %2746 = vst [vmem:[%s269 + $0xa0] sm:$0xff] %v2680
        %2747 = vst [vmem:[%s269 + $0xa8] sm:$0xff] %v2683
        %2748 = vst [vmem:[%s269 + $0xb0] sm:$0xff] %v2688
        %2749 = vst [vmem:[%s269 + $0xb8] sm:$0xff] %v2691
        %2750 = vst [vmem:[%s269 + $0xc0] sm:$0xff] %v2696
        %2751 = vst [vmem:[%s269 + $0xc8] sm:$0xff] %v2699
        %2752 = vst [vmem:[%s269 + $0xd0] sm:$0xff] %v2704
        %2753 = vst [vmem:[%s269 + $0xd8] sm:$0xff] %v2707
        %2754 = vst [vmem:[%s269 + $0xe0] sm:$0xff] %v2712
        %2755 = vst [vmem:[%s269 + $0xe8] sm:$0xff] %v2715
        %2756 = vst [vmem:[%s269 + $0xf0] sm:$0xff] %v2720
        %2757 = vst [vmem:[%s269 + $0xf8] sm:$0xff] %v2723
        %s2758 = sand.u32 %s126, 1
        %s2759 = scalar_lea.sflag [#allocation4], %s2758
        %s2760 = sand.u32 %s126, 1
        %s2761 = smul.addr %s2760, 256
        %s2762 = scalar_lea.vmem [#allocation8], %s2761
        // Predicated region
        $region49: #{tpu_custom_call.1} parent=35 // pred_check
          %p2763 = pneg %p136
        $region50: #{tpu_custom_call.1} parent=35 // pred_check_branch
          %2765 = sbr.rel (%p2763) target = $region52
        $region51: #{tpu_custom_call.1} parent=35 // pred_region
          %s2766 = smul.u32 32, %s24
          %s2768 = ssub.s32 4096, 4096
          %2769 = vsyncadd %s2759, %s2768
          %s2770 = smul.addr %s2766, 128
          %s2771 = scalar_lea.hbm %s4, %s2770
          %s2772 = sshll.u32 %s2762, 4
          %s2773 = int_to_ptr.vmem [resolvable:$true] %s2772
          %2778 = dma.vmem_to_hbm [thread:$0]  %s2773, 4096, %s2771, %s2759, 128, 128, 8
        $region52: #{tpu_custom_call.1} parent=35 // pred_fallthru
          _
      $region36: #{tpu_custom_call.1} parent=5 // pred_fallthru
        _
      %p2779 = scmp.le.s32.totalorder 2, %s19
      // Predicated region
      $region53: #{tpu_custom_call.1} parent=5 // pred_check
        %p2780 = pneg %p2779
      $region54: #{tpu_custom_call.1} parent=5 // pred_check_branch
        %2782 = sbr.rel (%p2780) target = $region56
      $region55: #{tpu_custom_call.1} parent=5 // pred_region
        %s2783 = ssub.s32 %s19, 2
        // Predicated region
        $region57: #{tpu_custom_call.1} parent=55 // pred_check
          %p2784 = pneg %p142
        $region58: #{tpu_custom_call.1} parent=55 // pred_check_branch
          %2786 = sbr.rel (%p2784) target = $region60
        $region59: #{tpu_custom_call.1} parent=55 // pred_region
          %s2787 = sand.u32 %s127, 1
          %s2788 = scalar_lea.sflag [#allocation4], %s2787
          %s2789 = sand.u32 %s127, 1
          %s2790 = smul.addr %s2789, 256
          %s2791 = scalar_lea.vmem [#allocation8], %s2790
          %2792 = dma.done %s2788, 4096
        $region60: #{tpu_custom_call.1} parent=55 // pred_fallthru
          _
      $region56: #{tpu_custom_call.1} parent=5 // pred_fallthru
        _
    $region6: #{tpu_custom_call.1} parent=1 // loop_footer
      %s23 = sadd.s32 1, %s19
    $region7: #{tpu_custom_call.1} parent=1 // loop_footer_branch
      %18 = sbr.rel target = $region3
    $region8: #{tpu_custom_call.1} parent=1 // loop_exit
      _
    %2793 = vsyncpa [#allocation3], 1
    %s2794 = scalar_lea.sflag [#allocation3], 1
    %2795 = vsyncpa %s2794, 1
    %2796 = vsyncpa [#allocation6], 1
    %s2797 = scalar_lea.sflag [#allocation6], 1
    %2798 = vsyncpa %s2797, 1
    %2799 = vsyncpa [#allocation4], 1
    %s2800 = scalar_lea.sflag [#allocation4], 1
    %2801 = vsyncpa %s2800, 1

</llo_original>
